<compile_context>
chip_gen: v5e
topology: v5e:2x2
jax: 0.10.0
libtpu: 0.0.40
codegen_flags: <defaults>
</compile_context>

<pallas_src>
import functools

import jax
import jax.numpy as jnp
from jax import lax
from jax.experimental import pallas as pl
from jax.experimental.pallas import tpu as pltpu

# ConvTranspose2d(k=4, s=2, p=1) phase decomposition:
# output row (2*y + py) gets contributions from zero-padded input row (y + sy)
# with kernel tap ky, for (sy, ky) in TAPS[py]. Same along W.
TAPS = (((0, 3), (1, 1)),   # output phase 0
        ((1, 2), (2, 0)))   # output phase 1

# 9 distinct (sy, sx) shifts used by the 4 output phases (deduped from 16 taps).
_SHIFTS = tuple((sy, sx) for sy in range(3) for sx in range(3))


def _build_phase_weight(w_pt, dtype):
    """(c_in, c_out, 4, 4) ConvTranspose2d weight -> (9*c_in, 4*c_out) im2col weight.

    Row block s = sy*3 + sx multiplies the input view shifted by (sy, sx) in the
    zero-padded input; column block p = py*2 + px is the output phase (py, px).
    Blocks not used by a phase stay zero (cheap: K is only 9*c_in).
    """
    c_in, c_out = w_pt.shape[0], w_pt.shape[1]
    w_big = jnp.zeros((9 * c_in, 4 * c_out), dtype)
    for py in range(2):
        for px in range(2):
            p = py * 2 + px
            for (sy, ky) in TAPS[py]:
                for (sx, kx) in TAPS[px]:
                    s = sy * 3 + sx
                    w_big = w_big.at[s * c_in:(s + 1) * c_in,
                                     p * c_out:(p + 1) * c_out].set(
                                         w_pt[:, :, ky, kx].astype(dtype))
    return w_big


def _deconv_phase_kernel(xpad_ref, w_ref, b_ref, raw_ref, sum_ref, sq_ref,
                         *, h, w, c_in, c_out, compute_dtype):
    """Pass 1 (per image): deconv + bias, phase-packed lane-dense output + BN partials.

    xpad_ref : (1, h+2, w+2, c_in)  zero-padded NHWC input tile
    w_ref    : (9*c_in, 4*c_out)    phase-packed im2col weight
    b_ref    : (1, 4*c_out)         bias tiled per phase
    raw_ref  : (1, h*w, 4*c_out)    raw deconv+bias output (phase in lane axis)
    sum_ref  : (1, 1, 4*c_out)      per-tile sum      (BN partial)
    sq_ref   : (1, 1, 4*c_out)      per-tile sum(x^2) (BN partial)
    """
    hw = h * w

    # Build the im2col LHS from the 9 distinct shifted views (deduped, built once).
    cols = []
    for (sy, sx) in _SHIFTS:
        v = xpad_ref[:, sy:sy + h, sx:sx + w, :]            # (1, h, w, c_in)
        cols.append(v.reshape(hw, c_in))
    lhs = jnp.concatenate(cols, axis=1).astype(compute_dtype)  # (hw, 9*c_in)

    # ONE fat matmul: (hw, 9*c_in) x (9*c_in, 4*c_out) -> lane-dense (hw, 4*c_out).
    acc = jnp.dot(lhs, w_ref[...].astype(compute_dtype),
                  preferred_element_type=jnp.float32)
    acc = acc + b_ref[...].astype(jnp.float32)

    raw_ref[0] = acc.astype(raw_ref.dtype)
    # BN batch-stat partials (fp32). Note: E[x^2]-mean^2 downstream can cancel for
    # large-magnitude activations; acceptable for this forward pass.
    sum_ref[0] = jnp.sum(acc, axis=0, keepdims=True)
    sq_ref[0] = jnp.sum(acc * acc, axis=0, keepdims=True)


def _bn_lrelu_kernel(raw_ref, scale_ref, shift_ref, o_ref, *, neg_slope):
    """Pass 2 (per image): y = raw * scale + shift, then LeakyReLU(0.1)."""
    y = raw_ref[...].astype(jnp.float32) * scale_ref[...] + shift_ref[...]
    o_ref[...] = jnp.where(y > 0, y, neg_slope * y).astype(o_ref.dtype)


def deconv4x4_forward(x_nchw, feat_nchw, w_pt, b, gamma, beta, *,
                      eps=1e-5, neg_slope=0.1,
                      matmul_dtype=jnp.float32, stage_dtype=jnp.float32):
    """x_nchw: (N, Cin, H, W); feat_nchw: (N, Cf, 2H, 2W); w_pt: (Cin, Cout, 4, 4)."""
    n, c_in, h, w = x_nchw.shape
    c_out = w_pt.shape[1]
    hw = h * w

    # Boundary layout glue (NCHW -> NHWC + 1-px zero pad).
    # TODO(synk): fold the zero-pad / transposes into kernel indexing and write the
    # activation directly into the concat buffer (input_output_aliases) to cut the
    # remaining wrapper HBM round trips.
    x = jnp.transpose(x_nchw, (0, 2, 3, 1))                  # NHWC
    xpad = jnp.pad(x, ((0, 0), (1, 1), (1, 1), (0, 0)))      # (N, H+2, W+2, Cin)

    w_big = _build_phase_weight(w_pt, matmul_dtype)          # (9*Cin, 4*Cout)
    b4 = jnp.tile(b.reshape(1, c_out).astype(jnp.float32), (1, 4))  # (1, 4*Cout)

    cparams = pltpu.CompilerParams(
        dimension_semantics=("parallel",),                   # megacore on v7x
        vmem_limit_bytes=64 * 1024 * 1024)                   # per-image tile must fit

    # ---- Pass 1: tiled (per-image) deconv + bias + BN partial sums ----
    kernel1 = functools.partial(_deconv_phase_kernel, h=h, w=w, c_in=c_in,
                                c_out=c_out, compute_dtype=matmul_dtype)
    raw, psum, psq = pl.pallas_call(
        kernel1,
        grid=(n,),
        in_specs=[
            pl.BlockSpec((1, h + 2, w + 2, c_in), lambda i: (i, 0, 0, 0)),
            pl.BlockSpec(w_big.shape, lambda i: (0, 0)),
            pl.BlockSpec((1, 4 * c_out), lambda i: (0, 0)),
        ],
        out_specs=(
            pl.BlockSpec((1, hw, 4 * c_out), lambda i: (i, 0, 0)),
            pl.BlockSpec((1, 1, 4 * c_out), lambda i: (i, 0, 0)),
            pl.BlockSpec((1, 1, 4 * c_out), lambda i: (i, 0, 0)),
        ),
        out_shape=(
            jax.ShapeDtypeStruct((n, hw, 4 * c_out), stage_dtype),
            jax.ShapeDtypeStruct((n, 1, 4 * c_out), jnp.float32),
            jax.ShapeDtypeStruct((n, 1, 4 * c_out), jnp.float32),
        ),
        compiler_params=cparams,
    )(xpad, w_big, b4)

    # ---- Tiny BN reduction over per-tile partials (BatchNorm2d training stats) ----
    count = jnp.float32(n * 4 * hw)
    total = psum.reshape(n, 4, c_out).sum(axis=(0, 1))
    total_sq = psq.reshape(n, 4, c_out).sum(axis=(0, 1))
    mean = total / count
    var = total_sq / count - mean * mean
    scale_c = gamma.astype(jnp.float32) * lax.rsqrt(var + eps)
    shift_c = beta.astype(jnp.float32) - mean * scale_c
    scale4 = jnp.tile(scale_c.reshape(1, c_out), (1, 4))     # phase-packed lanes
    shift4 = jnp.tile(shift_c.reshape(1, c_out), (1, 4))

    # ---- Pass 2: tiled scale/shift + LeakyReLU apply ----
    kernel2 = functools.partial(_bn_lrelu_kernel, neg_slope=neg_slope)
    y_ph = pl.pallas_call(
        kernel2,
        grid=(n,),
        in_specs=[
            pl.BlockSpec((1, hw, 4 * c_out), lambda i: (i, 0, 0)),
            pl.BlockSpec((1, 4 * c_out), lambda i: (0, 0)),
            pl.BlockSpec((1, 4 * c_out), lambda i: (0, 0)),
        ],
        out_specs=pl.BlockSpec((1, hw, 4 * c_out), lambda i: (i, 0, 0)),
        out_shape=jax.ShapeDtypeStruct((n, hw, 4 * c_out), jnp.float32),
        compiler_params=cparams,
    )(raw, scale4, shift4)

    # Glue: unpack the lane-packed 2x2 phases into the (2H, 2W) spatial grid.
    y = y_ph.reshape(n, h, w, 2, 2, c_out)                   # (N, H, W, py, px, C)
    y = jnp.transpose(y, (0, 1, 3, 2, 4, 5))                 # (N, H, py, W, px, C)
    y = y.reshape(n, 2 * h, 2 * w, c_out)                    # (N, 2H, 2W, C)

    feat = jnp.transpose(feat_nchw, (0, 2, 3, 1))            # NHWC
    out = jnp.concatenate([y, feat], axis=-1)                # torch.cat(dim=1) equiv
    return jnp.transpose(out, (0, 3, 1, 2))                  # back to NCHW


def _reference(x_nchw, feat_nchw, w_pt, b, gamma, beta, eps=1e-5, neg=0.1):
    """Pure-JAX reference for the forward pass (correctness check only)."""
    x = jnp.transpose(x_nchw, (0, 2, 3, 1))
    w_flip = jnp.transpose(w_pt[:, :, ::-1, ::-1], (2, 3, 0, 1))  # HWIO
    y = lax.conv_general_dilated(
        x, w_flip, window_strides=(1, 1), padding=((2, 2), (2, 2)),
        lhs_dilation=(2, 2), rhs_dilation=(1, 1),
        dimension_numbers=("NHWC", "HWIO", "NHWC"),
        precision=lax.Precision.HIGHEST)
    y = y + b
    mean = jnp.mean(y, axis=(0, 1, 2), keepdims=True)
    var = jnp.mean((y - mean) ** 2, axis=(0, 1, 2), keepdims=True)
    y = (y - mean) * lax.rsqrt(var + eps) * gamma + beta
    y = jnp.where(y > 0, y, neg * y)
    feat = jnp.transpose(feat_nchw, (0, 2, 3, 1))
    out = jnp.concatenate([y, feat], axis=-1)
    return jnp.transpose(out, (0, 3, 1, 2))


if __name__ == "__main__":
    key = jax.random.PRNGKey(0)
    n, c_in, c_out, c_feat, h, w = 2, 4, 4, 4, 16, 16

    k1, k2, k3, k4 = jax.random.split(key, 4)
    x = jax.random.normal(k1, (n, c_in, h, w), jnp.float32)
    feat = jax.random.normal(k2, (n, c_feat, 2 * h, 2 * w), jnp.float32)

    # PyTorch-default-like init for ConvTranspose2d; BatchNorm2d defaults (1, 0).
    bound = 1.0 / (c_in * 4 * 4) ** 0.5
    w_pt = jax.random.uniform(k3, (c_in, c_out, 4, 4), jnp.float32, -bound, bound)
    b = jax.random.uniform(k4, (c_out,), jnp.float32, -bound, bound)
    gamma = jnp.ones((c_out,), jnp.float32)
    beta = jnp.zeros((c_out,), jnp.float32)

    out = deconv4x4_forward(x, feat, w_pt, b, gamma, beta)
    out = jax.block_until_ready(out)

    ref = _reference(x, feat, w_pt, b, gamma, beta)
    assert out.shape == (n, c_out + c_feat, 2 * h, 2 * w), out.shape
    assert jnp.allclose(out, ref, atol=1e-4, rtol=1e-4), \
        float(jnp.max(jnp.abs(out - ref)))
    print("KERNEL_OK")
</pallas_src>

<mosaic_0001>
module attributes {stable_mosaic.version = 11 : i64} {
  func.func @_deconv_phase_kernel(%arg0: i32, %arg1: memref<1x18x18x4xf32, #tpu.memory_space<vmem>>, %arg2: memref<36x16xf32, #tpu.memory_space<vmem>>, %arg3: memref<1x16xf32, #tpu.memory_space<vmem>>, %arg4: memref<1x256x16xf32, #tpu.memory_space<vmem>>, %arg5: memref<1x1x16xf32, #tpu.memory_space<vmem>>, %arg6: memref<1x1x16xf32, #tpu.memory_space<vmem>>) attributes {dimension_semantics = [#tpu.dimension_semantics<parallel>], iteration_bounds = array<i64: 2>, scalar_prefetch = 0 : i64, scratch_operands = 0 : i64, tpu.core_type = #tpu.core_type<tc>, window_params = [{transform_indices = @transform_0, window_bounds = array<i64: 1, 18, 18, 4>}, {pipeline_mode = #tpu.pipeline_mode<synchronous>, transform_indices = @transform_1, window_bounds = array<i64: 36, 16>}, {pipeline_mode = #tpu.pipeline_mode<synchronous>, transform_indices = @transform_2, window_bounds = array<i64: 1, 16>}, {transform_indices = @transform_3, window_bounds = array<i64: 1, 256, 16>}, {transform_indices = @transform_4, window_bounds = array<i64: 1, 1, 16>}, {transform_indices = @transform_5, window_bounds = array<i64: 1, 1, 16>}]} {
    %c0 = arith.constant 0 : index
    %c0_0 = arith.constant 0 : index
    %c0_1 = arith.constant 0 : index
    %c0_2 = arith.constant 0 : index
    %0 = vector.load %arg1[%c0, %c0_0, %c0_1, %c0_2] : memref<1x18x18x4xf32, #tpu.memory_space<vmem>>, vector<1x16x16x4xf32>
    %1 = vector.shape_cast %0 : vector<1x16x16x4xf32> to vector<256x4xf32>
    %c0_3 = arith.constant 0 : index
    %c0_4 = arith.constant 0 : index
    %c1 = arith.constant 1 : index
    %c0_5 = arith.constant 0 : index
    %2 = vector.load %arg1[%c0_3, %c0_4, %c1, %c0_5] : memref<1x18x18x4xf32, #tpu.memory_space<vmem>>, vector<1x16x16x4xf32>
    %3 = vector.shape_cast %2 : vector<1x16x16x4xf32> to vector<256x4xf32>
    %c0_6 = arith.constant 0 : index
    %c0_7 = arith.constant 0 : index
    %c2 = arith.constant 2 : index
    %c0_8 = arith.constant 0 : index
    %4 = vector.load %arg1[%c0_6, %c0_7, %c2, %c0_8] : memref<1x18x18x4xf32, #tpu.memory_space<vmem>>, vector<1x16x16x4xf32>
    %5 = vector.shape_cast %4 : vector<1x16x16x4xf32> to vector<256x4xf32>
    %c0_9 = arith.constant 0 : index
    %c1_10 = arith.constant 1 : index
    %c0_11 = arith.constant 0 : index
    %c0_12 = arith.constant 0 : index
    %6 = vector.load %arg1[%c0_9, %c1_10, %c0_11, %c0_12] : memref<1x18x18x4xf32, #tpu.memory_space<vmem>>, vector<1x16x16x4xf32>
    %7 = vector.shape_cast %6 : vector<1x16x16x4xf32> to vector<256x4xf32>
    %c0_13 = arith.constant 0 : index
    %c1_14 = arith.constant 1 : index
    %c1_15 = arith.constant 1 : index
    %c0_16 = arith.constant 0 : index
    %8 = vector.load %arg1[%c0_13, %c1_14, %c1_15, %c0_16] : memref<1x18x18x4xf32, #tpu.memory_space<vmem>>, vector<1x16x16x4xf32>
    %9 = vector.shape_cast %8 : vector<1x16x16x4xf32> to vector<256x4xf32>
    %c0_17 = arith.constant 0 : index
    %c1_18 = arith.constant 1 : index
    %c2_19 = arith.constant 2 : index
    %c0_20 = arith.constant 0 : index
    %10 = vector.load %arg1[%c0_17, %c1_18, %c2_19, %c0_20] : memref<1x18x18x4xf32, #tpu.memory_space<vmem>>, vector<1x16x16x4xf32>
    %11 = vector.shape_cast %10 : vector<1x16x16x4xf32> to vector<256x4xf32>
    %c0_21 = arith.constant 0 : index
    %c2_22 = arith.constant 2 : index
    %c0_23 = arith.constant 0 : index
    %c0_24 = arith.constant 0 : index
    %12 = vector.load %arg1[%c0_21, %c2_22, %c0_23, %c0_24] : memref<1x18x18x4xf32, #tpu.memory_space<vmem>>, vector<1x16x16x4xf32>
    %13 = vector.shape_cast %12 : vector<1x16x16x4xf32> to vector<256x4xf32>
    %c0_25 = arith.constant 0 : index
    %c2_26 = arith.constant 2 : index
    %c1_27 = arith.constant 1 : index
    %c0_28 = arith.constant 0 : index
    %14 = vector.load %arg1[%c0_25, %c2_26, %c1_27, %c0_28] : memref<1x18x18x4xf32, #tpu.memory_space<vmem>>, vector<1x16x16x4xf32>
    %15 = vector.shape_cast %14 : vector<1x16x16x4xf32> to vector<256x4xf32>
    %c0_29 = arith.constant 0 : index
    %c2_30 = arith.constant 2 : index
    %c2_31 = arith.constant 2 : index
    %c0_32 = arith.constant 0 : index
    %16 = vector.load %arg1[%c0_29, %c2_30, %c2_31, %c0_32] : memref<1x18x18x4xf32, #tpu.memory_space<vmem>>, vector<1x16x16x4xf32>
    %17 = vector.shape_cast %16 : vector<1x16x16x4xf32> to vector<256x4xf32>
    %18 = tpu.concatenate %1, %3, %5, %7, %9, %11, %13, %15, %17 in 1 : vector<256x4xf32>, vector<256x4xf32>, vector<256x4xf32>, vector<256x4xf32>, vector<256x4xf32>, vector<256x4xf32>, vector<256x4xf32>, vector<256x4xf32>, vector<256x4xf32> -> vector<256x36xf32>
    %c0_33 = arith.constant 0 : index
    %c0_34 = arith.constant 0 : index
    %19 = vector.load %arg2[%c0_33, %c0_34] : memref<36x16xf32, #tpu.memory_space<vmem>>, vector<36x16xf32>
    %cst = arith.constant dense<0.000000e+00> : vector<256x16xf32>
    %20 = tpu.matmul %18, %19, %cst {dimension_numbers = #tpu.dot_dimension_numbers<[1], [0], [0], [1], [0, 0, 1, 1], [], []>} : vector<256x36xf32>, vector<36x16xf32>, vector<256x16xf32> -> vector<256x16xf32>
    %c0_35 = arith.constant 0 : index
    %c0_36 = arith.constant 0 : index
    %21 = vector.load %arg3[%c0_35, %c0_36] : memref<1x16xf32, #tpu.memory_space<vmem>>, vector<1x16xf32>
    %22 = vector.broadcast %21 : vector<1x16xf32> to vector<256x16xf32>
    %23 = arith.addf %20, %22 : vector<256x16xf32>
    %c0_37 = arith.constant 0 : index
    %c0_38 = arith.constant 0 : index
    %c0_39 = arith.constant 0 : index
    %24 = vector.load %arg4[%c0_37, %c0_38, %c0_39] : memref<1x256x16xf32, #tpu.memory_space<vmem>>, vector<1x256x16xf32>
    %25 = vector.shape_cast %24 : vector<1x256x16xf32> to vector<256x16xf32>
    %26 = vector.shape_cast %23 : vector<256x16xf32> to vector<1x256x16xf32>
    tpu.vector_store %arg4[%c0_37, %c0_38, %c0_39], %26 {strides = array<i32>} : memref<1x256x16xf32, #tpu.memory_space<vmem>>, vector<1x256x16xf32>,
    %cst_40 = arith.constant dense<0.000000e+00> : vector<16xf32>
    %27 = vector.multi_reduction <add>, %23, %cst_40 [0] : vector<256x16xf32> to vector<16xf32>
    %28 = vector.shape_cast %27 : vector<16xf32> to vector<1x16xf32>
    %c0_41 = arith.constant 0 : index
    %c0_42 = arith.constant 0 : index
    %c0_43 = arith.constant 0 : index
    %29 = vector.load %arg5[%c0_41, %c0_42, %c0_43] : memref<1x1x16xf32, #tpu.memory_space<vmem>>, vector<1x1x16xf32>
    %30 = vector.shape_cast %29 : vector<1x1x16xf32> to vector<1x16xf32>
    %31 = vector.shape_cast %28 : vector<1x16xf32> to vector<1x1x16xf32>
    tpu.vector_store %arg5[%c0_41, %c0_42, %c0_43], %31 {strides = array<i32>} : memref<1x1x16xf32, #tpu.memory_space<vmem>>, vector<1x1x16xf32>,
    %32 = arith.mulf %23, %23 : vector<256x16xf32>
    %cst_44 = arith.constant dense<0.000000e+00> : vector<16xf32>
    %33 = vector.multi_reduction <add>, %32, %cst_44 [0] : vector<256x16xf32> to vector<16xf32>
    %34 = vector.shape_cast %33 : vector<16xf32> to vector<1x16xf32>
    %c0_45 = arith.constant 0 : index
    %c0_46 = arith.constant 0 : index
    %c0_47 = arith.constant 0 : index
    %35 = vector.load %arg6[%c0_45, %c0_46, %c0_47] : memref<1x1x16xf32, #tpu.memory_space<vmem>>, vector<1x1x16xf32>
    %36 = vector.shape_cast %35 : vector<1x1x16xf32> to vector<1x16xf32>
    %37 = vector.shape_cast %34 : vector<1x16xf32> to vector<1x1x16xf32>
    tpu.vector_store %arg6[%c0_45, %c0_46, %c0_47], %37 {strides = array<i32>} : memref<1x1x16xf32, #tpu.memory_space<vmem>>, vector<1x1x16xf32>,
    return
  }
  func.func @transform_0(%arg0: i32) -> (i32, i32, i32, i32) {
    %c0_i32 = arith.constant 0 : i32
    %c0_i32_0 = arith.constant 0 : i32
    %c0_i32_1 = arith.constant 0 : i32
    %c0_i32_2 = arith.constant 0 : i32
    return %arg0, %c0_i32, %c0_i32_0, %c0_i32_1 : i32, i32, i32, i32
  }
  func.func @transform_1(%arg0: i32) -> (i32, i32) {
    %c0_i32 = arith.constant 0 : i32
    %c0_i32_0 = arith.constant 0 : i32
    %c0_i32_1 = arith.constant 0 : i32
    return %c0_i32, %c0_i32_0 : i32, i32
  }
  func.func @transform_2(%arg0: i32) -> (i32, i32) {
    %c0_i32 = arith.constant 0 : i32
    %c0_i32_0 = arith.constant 0 : i32
    %c0_i32_1 = arith.constant 0 : i32
    return %c0_i32, %c0_i32_0 : i32, i32
  }
  func.func @transform_3(%arg0: i32) -> (i32, i32, i32) {
    %c0_i32 = arith.constant 0 : i32
    %c0_i32_0 = arith.constant 0 : i32
    %c0_i32_1 = arith.constant 0 : i32
    return %arg0, %c0_i32, %c0_i32_0 : i32, i32, i32
  }
  func.func @transform_4(%arg0: i32) -> (i32, i32, i32) {
    %c0_i32 = arith.constant 0 : i32
    %c0_i32_0 = arith.constant 0 : i32
    %c0_i32_1 = arith.constant 0 : i32
    return %arg0, %c0_i32, %c0_i32_0 : i32, i32, i32
  }
  func.func @transform_5(%arg0: i32) -> (i32, i32, i32) {
    %c0_i32 = arith.constant 0 : i32
    %c0_i32_0 = arith.constant 0 : i32
    %c0_i32_1 = arith.constant 0 : i32
    return %arg0, %c0_i32, %c0_i32_0 : i32, i32, i32
  }
}

</mosaic_0001>

<llo_original>
// kernel: tpu_custom_call.1
$region0: #{tpu_custom_call.1}
  #allocation0 [shape = 'u32[]', space=smem, size = 0x4, offset = 0x4, fixed_abs, tag = 'smem constant byte address 0x4 - core index']
  #allocation1 [shape = 'u32[72,128]{1,0:T(1,128)}', space=vmem, size = 0x9000, scoped, tag = 'internal scratch']
  %s0 = inlined_call_operand.vmem [shape: f32[2,18,18,4], index: 0, kind: input, shape index: {}]
  %s1 = inlined_call_operand.vmem [shape: f32[36,16], index: 1, kind: input, shape index: {}]
  %s2 = inlined_call_operand.vmem [shape: f32[1,16], index: 2, kind: input, shape index: {}]
  %s3 = inlined_call_operand.vmem [shape: f32[2,256,16], index: 3, kind: output, shape index: {0}]
  %s4 = inlined_call_operand.hbm [shape: f32[2,1,16], index: 4, kind: output, shape index: {1}]
  %s5 = inlined_call_operand.hbm [shape: f32[2,1,16], index: 5, kind: output, shape index: {2}]
  %6 = xla_tuple %s3, %s4, %s5
  %s7 = sld [smem:[#allocation0]]
  $region61: #{tpu_custom_call.1} parent=0
    _
  %s9 = ssub.s32 1, %s7
  %s10 = scalar_select 0, %s9, %s7
  $region1: #{tpu_custom_call.1} parent=0
    #allocation2 [shape = 'u8[1024]{0}', space=vmem, size = 0x400, scoped, tag = 'output window, operand 1']
    #allocation3 [shape = 's32[2]{0}', space=sflag, size = 0x8, scoped, tag = 'scoped memory for tpu_custom_call.1']
    #allocation4 [shape = 'u8[1024]{0}', space=vmem, size = 0x400, scoped, tag = 'output window, operand 2']
    #allocation5 [shape = 's32[2]{0}', space=sflag, size = 0x8, scoped, tag = 'scoped memory for tpu_custom_call.1']
    %11 = vsyncpa [#allocation3], 0
    %s12 = scalar_lea.sflag [#allocation3], 1
    %13 = vsyncpa %s12, 0
    %14 = vsyncpa [#allocation5], 0
    %s15 = scalar_lea.sflag [#allocation5], 1
    %16 = vsyncpa %s15, 0
    loop: start=0, step=1, limit=4
    $region2: #{tpu_custom_call.1} parent=1 // loop_pre_header
      _
    $region3: #{tpu_custom_call.1} parent=1 // loop_header
      %s18 = sphi 0, %s22
      %p19 = scmp.ge.s32.totalorder %s18, 4
      %s28 = sphi 0, %s30
      %s31 = sphi 0, %s28
      %s32 = sphi 0, %s31
      %s48 = sphi 0, %s32
      %s52 = sphi 0, %s52
      %s54 = sphi 0, %s52
      %s55 = sphi 0, %s54
      %s69 = sphi 0, %s55
      %s73 = sphi 0, %s73
      %s75 = sphi 0, %s73
      %s76 = sphi 0, %s75
      %s90 = sphi 0, %s76
      %s96 = sphi 0, %s98
      %s99 = sphi 0, %s96
      %s100 = sphi 0, %s99
      %s116 = sphi 0, %s100
      %s122 = sphi 0, %s124
      %s125 = sphi 0, %s122
      %s126 = sphi 0, %s125
      %s142 = sphi 0, %s126
      %s148 = sphi 0, %s150
      %s151 = sphi 0, %s148
      %s152 = sphi 0, %s151
      %s168 = sphi 0, %s152
    $region4: #{tpu_custom_call.1} parent=1 // loop_header_branch
      %21 = sbr.rel (%p19) target = $region8
    $region5: #{tpu_custom_call.1} parent=1 // loop_body
      %s23 = ssub.s32 %s18, 1
      %s24 = ssub.s32 %s18, 2
      %s25 = sadd.s32 %s18, 1
      %s26 = ssub.s32 %s18, %s25
      %p27 = scmp.eq.s32.totalorder %s26, 0
      %s29 = sadd.s32 %s28, 1
      %s30 = scalar_select %p27, %s28, %s29
      %p33 = pneg %p27
      %p34 = scmp.eq.s32.totalorder %s18, 1
      %p35 = por %p33, %p34
      %p36 = scmp.ne.s32.totalorder %s28, %s31
      %p37 = scmp.eq.s32.totalorder %s18, 0
      %p38 = por %p36, %p37
      %p39 = scmp.ne.s32.totalorder %s28, %s31
      %p40 = scmp.eq.s32.totalorder %s23, 1
      %p41 = por %p39, %p40
      %p42 = scmp.ne.s32.totalorder %s31, %s32
      %p43 = scmp.eq.s32.totalorder %s23, 0
      %p44 = por %p42, %p43
      %p45 = scmp.ne.s32.totalorder %s31, %s32
      %p46 = scmp.eq.s32.totalorder %s24, 1
      %p47 = por %p45, %p46
      %p49 = scmp.ne.s32.totalorder %s32, %s48
      %p50 = scmp.eq.s32.totalorder %s24, 0
      %p51 = por %p49, %p50
      %s53 = sadd.s32 %s52, 1
      %p56 = scmp.eq.s32.totalorder %s18, 1
      %p57 = scmp.ne.s32.totalorder %s52, %s54
      %p58 = scmp.eq.s32.totalorder %s18, 0
      %p59 = por %p57, %p58
      %p60 = scmp.ne.s32.totalorder %s52, %s54
      %p61 = scmp.eq.s32.totalorder %s23, 1
      %p62 = por %p60, %p61
      %p63 = scmp.ne.s32.totalorder %s54, %s55
      %p64 = scmp.eq.s32.totalorder %s23, 0
      %p65 = por %p63, %p64
      %p66 = scmp.ne.s32.totalorder %s54, %s55
      %p67 = scmp.eq.s32.totalorder %s24, 1
      %p68 = por %p66, %p67
      %p70 = scmp.ne.s32.totalorder %s55, %s69
      %p71 = scmp.eq.s32.totalorder %s24, 0
      %p72 = por %p70, %p71
      %s74 = sadd.s32 %s73, 1
      %p77 = scmp.eq.s32.totalorder %s18, 1
      %p78 = scmp.ne.s32.totalorder %s73, %s75
      %p79 = scmp.eq.s32.totalorder %s18, 0
      %p80 = por %p78, %p79
      %p81 = scmp.ne.s32.totalorder %s73, %s75
      %p82 = scmp.eq.s32.totalorder %s23, 1
      %p83 = por %p81, %p82
      %p84 = scmp.ne.s32.totalorder %s75, %s76
      %p85 = scmp.eq.s32.totalorder %s23, 0
      %p86 = por %p84, %p85
      %p87 = scmp.ne.s32.totalorder %s75, %s76
      %p88 = scmp.eq.s32.totalorder %s24, 1
      %p89 = por %p87, %p88
      %p91 = scmp.ne.s32.totalorder %s76, %s90
      %p92 = scmp.eq.s32.totalorder %s24, 0
      %p93 = por %p91, %p92
      %s94 = ssub.s32 %s18, %s25
      %p95 = scmp.eq.s32.totalorder %s94, 0
      %s97 = sadd.s32 %s96, 1
      %s98 = scalar_select %p95, %s96, %s97
      %p101 = pneg %p95
      %p102 = scmp.eq.s32.totalorder %s18, 1
      %p103 = por %p101, %p102
      %p104 = scmp.ne.s32.totalorder %s96, %s99
      %p105 = scmp.eq.s32.totalorder %s18, 0
      %p106 = por %p104, %p105
      %p107 = scmp.ne.s32.totalorder %s96, %s99
      %p108 = scmp.eq.s32.totalorder %s23, 1
      %p109 = por %p107, %p108
      %p110 = scmp.ne.s32.totalorder %s99, %s100
      %p111 = scmp.eq.s32.totalorder %s23, 0
      %p112 = por %p110, %p111
      %p113 = scmp.ne.s32.totalorder %s99, %s100
      %p114 = scmp.eq.s32.totalorder %s24, 1
      %p115 = por %p113, %p114
      %p117 = scmp.ne.s32.totalorder %s100, %s116
      %p118 = scmp.eq.s32.totalorder %s24, 0
      %p119 = por %p117, %p118
      %s120 = ssub.s32 %s18, %s25
      %p121 = scmp.eq.s32.totalorder %s120, 0
      %s123 = sadd.s32 %s122, 1
      %s124 = scalar_select %p121, %s122, %s123
      %p127 = pneg %p121
      %p128 = scmp.eq.s32.totalorder %s18, 1
      %p129 = por %p127, %p128
      %p130 = scmp.ne.s32.totalorder %s122, %s125
      %p131 = scmp.eq.s32.totalorder %s18, 0
      %p132 = por %p130, %p131
      %p133 = scmp.ne.s32.totalorder %s122, %s125
      %p134 = scmp.eq.s32.totalorder %s23, 1
      %p135 = por %p133, %p134
      %p136 = scmp.ne.s32.totalorder %s125, %s126
      %p137 = scmp.eq.s32.totalorder %s23, 0
      %p138 = por %p136, %p137
      %p139 = scmp.ne.s32.totalorder %s125, %s126
      %p140 = scmp.eq.s32.totalorder %s24, 1
      %p141 = por %p139, %p140
      %p143 = scmp.ne.s32.totalorder %s126, %s142
      %p144 = scmp.eq.s32.totalorder %s24, 0
      %p145 = por %p143, %p144
      %s146 = ssub.s32 %s18, %s25
      %p147 = scmp.eq.s32.totalorder %s146, 0
      %s149 = sadd.s32 %s148, 1
      %s150 = scalar_select %p147, %s148, %s149
      %p153 = pneg %p147
      %p154 = scmp.eq.s32.totalorder %s18, 1
      %p155 = por %p153, %p154
      %p156 = scmp.ne.s32.totalorder %s148, %s151
      %p157 = scmp.eq.s32.totalorder %s18, 0
      %p158 = por %p156, %p157
      %p159 = scmp.ne.s32.totalorder %s148, %s151
      %p160 = scmp.eq.s32.totalorder %s23, 1
      %p161 = por %p159, %p160
      %p162 = scmp.ne.s32.totalorder %s151, %s152
      %p163 = scmp.eq.s32.totalorder %s23, 0
      %p164 = por %p162, %p163
      %p165 = scmp.ne.s32.totalorder %s151, %s152
      %p166 = scmp.eq.s32.totalorder %s24, 1
      %p167 = por %p165, %p166
      %p169 = scmp.ne.s32.totalorder %s152, %s168
      %p170 = scmp.eq.s32.totalorder %s24, 0
      %p171 = por %p169, %p170
      %p172 = scmp.le.s32.totalorder 1, %s18
      %p173 = scmp.lt.s32.totalorder %s18, 3
      %p174 = pnand %p172, %p173
      %p175 = pneg %p174
      // Predicated region
      $region9: #{tpu_custom_call.1} parent=5 // pred_check
        _
      $region10: #{tpu_custom_call.1} parent=5 // pred_check_branch
        %177 = sbr.rel (%p174) target = $region12
      $region11: #{tpu_custom_call.1} parent=5 // pred_region
        %s178 = ssub.s32 %s18, 1
        // Predicated region
        $region13: #{tpu_custom_call.1} parent=11 // pred_check
          %p179 = pneg %p65
        $region14: #{tpu_custom_call.1} parent=11 // pred_check_branch
          %181 = sbr.rel (%p179) target = $region16
        $region15: #{tpu_custom_call.1} parent=11 // pred_region
          _
        $region16: #{tpu_custom_call.1} parent=11 // pred_fallthru
          _
        // Predicated region
        $region17: #{tpu_custom_call.1} parent=11 // pred_check
          %p182 = pneg %p86
        $region18: #{tpu_custom_call.1} parent=11 // pred_check_branch
          %184 = sbr.rel (%p182) target = $region20
        $region19: #{tpu_custom_call.1} parent=11 // pred_region
          _
        $region20: #{tpu_custom_call.1} parent=11 // pred_fallthru
          _
      $region12: #{tpu_custom_call.1} parent=5 // pred_fallthru
        _
      %p185 = scmp.lt.s32.totalorder %s18, 2
      // Predicated region
      $region21: #{tpu_custom_call.1} parent=5 // pred_check
        %p186 = pneg %p185
      $region22: #{tpu_custom_call.1} parent=5 // pred_check_branch
        %188 = sbr.rel (%p186) target = $region24
      $region23: #{tpu_custom_call.1} parent=5 // pred_region
        // Predicated region
        $region25: #{tpu_custom_call.1} parent=23 // pred_check
          %p189 = pneg %p38
        $region26: #{tpu_custom_call.1} parent=23 // pred_check_branch
          %191 = sbr.rel (%p189) target = $region28
        $region27: #{tpu_custom_call.1} parent=23 // pred_region
          %p192 = scmp.lt.s32.totalorder %s18, 1
          %s193 = scalar_select %p192, %s18, 1
          %s194 = smul.addr %s193, 54
          %s195 = smul.addr %s194, 8
          %s196 = scalar_lea.vmem %s0, %s195
        $region28: #{tpu_custom_call.1} parent=23 // pred_fallthru
          _
      $region24: #{tpu_custom_call.1} parent=5 // pred_fallthru
        _
      %p197 = scmp.le.s32.totalorder 1, %s18
      %p198 = scmp.lt.s32.totalorder %s18, 3
      %p199 = pnand %p197, %p198
      %p200 = pneg %p199
      // Predicated region
      $region29: #{tpu_custom_call.1} parent=5 // pred_check
        _
      $region30: #{tpu_custom_call.1} parent=5 // pred_check_branch
        %202 = sbr.rel (%p199) target = $region32
      $region31: #{tpu_custom_call.1} parent=5 // pred_region
        %s203 = ssub.s32 %s18, 1
        %p204 = scmp.lt.s32.totalorder %s23, 1
        %s205 = scalar_select %p204, %s23, 1
        %s206 = smul.addr %s205, 54
        %s207 = smul.addr %s206, 8
        %s208 = scalar_lea.vmem %s0, %s207
        %p209 = pneg %p44
        %p210 = pneg %p41
        %p211 = pneg %p65
        %p212 = pneg %p62
        %p213 = pneg %p86
        %p214 = pneg %p83
        %p215 = pneg %p112
        %p216 = pneg %p109
        %p217 = scmp.lt.s32.totalorder %s23, 1
        %s218 = scalar_select %p217, %s23, 1
        %s219 = smul.addr %s218, 32
        %s220 = smul.addr %s219, 8
        %s221 = scalar_lea.vmem %s3, %s220
        %p222 = pneg %p138
        %p223 = pneg %p135
        %s224 = sand.u32 %s125, 1
        %s225 = scalar_lea.sflag [#allocation3], %s224
        %s226 = sand.u32 %s125, 1
        %s227 = scalar_lea.vmem [#allocation2], %s226
        %p228 = pneg %p164
        %p229 = pneg %p161
        %s230 = sand.u32 %s151, 1
        %s231 = scalar_lea.sflag [#allocation5], %s230
        %s232 = sand.u32 %s151, 1
        %s233 = scalar_lea.vmem [#allocation4], %s232
        %p234 = scmp.lt.s32.totalorder %s23, 1
        %s235 = scalar_select %p234, %s23, 1
        %s236 = smul.addr %s235, 54
        %s237 = smul.addr %s236, 8
        %s238 = scalar_lea.vmem %s0, %s237
        %p239 = scmp.lt.s32.totalorder %s23, 1
        %s240 = scalar_select %p239, %s23, 1
        %s241 = smul.addr %s240, 32
        %s242 = smul.addr %s241, 8
        %s243 = scalar_lea.vmem %s3, %s242
        %v244 = vld [vmem:[%s238] sm:$0xff]
        %v245 = vld [vmem:[%s238 + $0x8] sm:$0xff]
        %v246 = vld [vmem:[%s238 + $0x18] sm:$0xff]
        %v247 = vld [vmem:[%s238 + $0x20] sm:$0xff]
        %v248 = vld [vmem:[%s238 + $0x30] sm:$0xff]
        %v249 = vld [vmem:[%s238 + $0x38] sm:$0xff]
        %v250 = vld [vmem:[%s238 + $0x48] sm:$0xff]
        %v251 = vld [vmem:[%s238 + $0x50] sm:$0xff]
        %v252 = vld [vmem:[%s238 + $0x60] sm:$0xff]
        %v253 = vld [vmem:[%s238 + $0x68] sm:$0xff]
        %v254 = vld [vmem:[%s238 + $0x78] sm:$0xff]
        %v255 = vld [vmem:[%s238 + $0x80] sm:$0xff]
        %v256 = vld [vmem:[%s238 + $0x90] sm:$0xff]
        %v257 = vld [vmem:[%s238 + $0x98] sm:$0xff]
        %v258 = vld [vmem:[%s238 + $0xa8] sm:$0xff]
        %v259 = vld [vmem:[%s238 + $0xb0] sm:$0xff]
        %v260 = vld [vmem:[%s238 + $0xc0] sm:$0xff]
        %v261 = vld [vmem:[%s238 + $0xc8] sm:$0xff]
        %v262 = vld [vmem:[%s238 + $0xd8] sm:$0xff]
        %v263 = vld [vmem:[%s238 + $0xe0] sm:$0xff]
        %v264 = vld [vmem:[%s238 + $0xf0] sm:$0xff]
        %v265 = vld [vmem:[%s238 + $0xf8] sm:$0xff]
        %v266 = vld [vmem:[%s238 + $0x108] sm:$0xff]
        %v267 = vld [vmem:[%s238 + $0x110] sm:$0xff]
        %v268 = vld [vmem:[%s238 + $0x120] sm:$0xff]
        %v269 = vld [vmem:[%s238 + $0x128] sm:$0xff]
        %v270 = vld [vmem:[%s238 + $0x138] sm:$0xff]
        %v271 = vld [vmem:[%s238 + $0x140] sm:$0xff]
        %v272 = vld [vmem:[%s238 + $0x150] sm:$0xff]
        %v273 = vld [vmem:[%s238 + $0x158] sm:$0xff]
        %v274 = vld [vmem:[%s238 + $0x168] sm:$0xff]
        %v275 = vld [vmem:[%s238 + $0x170] sm:$0xff]
        %v276 = vld [vmem:[%s238 + $0x1] sm:$0xff]
        %v277 = vld [vmem:[%s238 + $0x9] sm:$0xff]
        %v278 = vld [vmem:[%s238 + $0x19] sm:$0xff]
        %v279 = vld [vmem:[%s238 + $0x21] sm:$0xff]
        %v280 = vld [vmem:[%s238 + $0x31] sm:$0xff]
        %v281 = vld [vmem:[%s238 + $0x39] sm:$0xff]
        %v282 = vld [vmem:[%s238 + $0x49] sm:$0xff]
        %v283 = vld [vmem:[%s238 + $0x51] sm:$0xff]
        %v284 = vld [vmem:[%s238 + $0x61] sm:$0xff]
        %v285 = vld [vmem:[%s238 + $0x69] sm:$0xff]
        %v286 = vld [vmem:[%s238 + $0x79] sm:$0xff]
        %v287 = vld [vmem:[%s238 + $0x81] sm:$0xff]
        %v288 = vld [vmem:[%s238 + $0x91] sm:$0xff]
        %v289 = vld [vmem:[%s238 + $0x99] sm:$0xff]
        %v290 = vld [vmem:[%s238 + $0xa9] sm:$0xff]
        %v291 = vld [vmem:[%s238 + $0xb1] sm:$0xff]
        %v292 = vld [vmem:[%s238 + $0xc1] sm:$0xff]
        %v293 = vld [vmem:[%s238 + $0xc9] sm:$0xff]
        %v294 = vld [vmem:[%s238 + $0xd9] sm:$0xff]
        %v295 = vld [vmem:[%s238 + $0xe1] sm:$0xff]
        %v296 = vld [vmem:[%s238 + $0xf1] sm:$0xff]
        %v297 = vld [vmem:[%s238 + $0xf9] sm:$0xff]
        %v298 = vld [vmem:[%s238 + $0x109] sm:$0xff]
        %v299 = vld [vmem:[%s238 + $0x111] sm:$0xff]
        %v300 = vld [vmem:[%s238 + $0x121] sm:$0xff]
        %v301 = vld [vmem:[%s238 + $0x129] sm:$0xff]
        %v302 = vld [vmem:[%s238 + $0x139] sm:$0xff]
        %v303 = vld [vmem:[%s238 + $0x141] sm:$0xff]
        %v304 = vld [vmem:[%s238 + $0x151] sm:$0xff]
        %v305 = vld [vmem:[%s238 + $0x159] sm:$0xff]
        %v306 = vld [vmem:[%s238 + $0x169] sm:$0xff]
        %v307 = vld [vmem:[%s238 + $0x171] sm:$0xff]
        %v308 = vld [vmem:[%s238 + $0x2] sm:$0xff]
        %v309 = vld [vmem:[%s238 + $0xa] sm:$0xff]
        %v310 = vld [vmem:[%s238 + $0x1a] sm:$0xff]
        %v311 = vld [vmem:[%s238 + $0x22] sm:$0xff]
        %v312 = vld [vmem:[%s238 + $0x32] sm:$0xff]
        %v313 = vld [vmem:[%s238 + $0x3a] sm:$0xff]
        %v314 = vld [vmem:[%s238 + $0x4a] sm:$0xff]
        %v315 = vld [vmem:[%s238 + $0x52] sm:$0xff]
        %v316 = vld [vmem:[%s238 + $0x62] sm:$0xff]
        %v317 = vld [vmem:[%s238 + $0x6a] sm:$0xff]
        %v318 = vld [vmem:[%s238 + $0x7a] sm:$0xff]
        %v319 = vld [vmem:[%s238 + $0x82] sm:$0xff]
        %v320 = vld [vmem:[%s238 + $0x92] sm:$0xff]
        %v321 = vld [vmem:[%s238 + $0x9a] sm:$0xff]
        %v322 = vld [vmem:[%s238 + $0xaa] sm:$0xff]
        %v323 = vld [vmem:[%s238 + $0xb2] sm:$0xff]
        %v324 = vld [vmem:[%s238 + $0xc2] sm:$0xff]
        %v325 = vld [vmem:[%s238 + $0xca] sm:$0xff]
        %v326 = vld [vmem:[%s238 + $0xda] sm:$0xff]
        %v327 = vld [vmem:[%s238 + $0xe2] sm:$0xff]
        %v328 = vld [vmem:[%s238 + $0xf2] sm:$0xff]
        %v329 = vld [vmem:[%s238 + $0xfa] sm:$0xff]
        %v330 = vld [vmem:[%s238 + $0x10a] sm:$0xff]
        %v331 = vld [vmem:[%s238 + $0x112] sm:$0xff]
        %v332 = vld [vmem:[%s238 + $0x122] sm:$0xff]
        %v333 = vld [vmem:[%s238 + $0x12a] sm:$0xff]
        %v334 = vld [vmem:[%s238 + $0x13a] sm:$0xff]
        %v335 = vld [vmem:[%s238 + $0x142] sm:$0xff]
        %v336 = vld [vmem:[%s238 + $0x152] sm:$0xff]
        %v337 = vld [vmem:[%s238 + $0x15a] sm:$0xff]
        %v338 = vld [vmem:[%s238 + $0x16a] sm:$0xff]
        %v339 = vld [vmem:[%s238 + $0x172] sm:$0xff]
        %s340 = scalar_lea.vmem %s238, 24
        %v341 = vld [vmem:[%s340] sm:$0xff]
        %v342 = vld [vmem:[%s340 + $0x8] sm:$0xff]
        %v343 = vld [vmem:[%s340 + $0x18] sm:$0xff]
        %v344 = vld [vmem:[%s340 + $0x20] sm:$0xff]
        %v345 = vld [vmem:[%s340 + $0x30] sm:$0xff]
        %v346 = vld [vmem:[%s340 + $0x38] sm:$0xff]
        %v347 = vld [vmem:[%s340 + $0x48] sm:$0xff]
        %v348 = vld [vmem:[%s340 + $0x50] sm:$0xff]
        %v349 = vld [vmem:[%s340 + $0x60] sm:$0xff]
        %v350 = vld [vmem:[%s340 + $0x68] sm:$0xff]
        %v351 = vld [vmem:[%s340 + $0x78] sm:$0xff]
        %v352 = vld [vmem:[%s340 + $0x80] sm:$0xff]
        %v353 = vld [vmem:[%s340 + $0x90] sm:$0xff]
        %v354 = vld [vmem:[%s340 + $0x98] sm:$0xff]
        %v355 = vld [vmem:[%s340 + $0xa8] sm:$0xff]
        %v356 = vld [vmem:[%s340 + $0xb0] sm:$0xff]
        %v357 = vld [vmem:[%s340 + $0xc0] sm:$0xff]
        %v358 = vld [vmem:[%s340 + $0xc8] sm:$0xff]
        %v359 = vld [vmem:[%s340 + $0xd8] sm:$0xff]
        %v360 = vld [vmem:[%s340 + $0xe0] sm:$0xff]
        %v361 = vld [vmem:[%s340 + $0xf0] sm:$0xff]
        %v362 = vld [vmem:[%s340 + $0xf8] sm:$0xff]
        %v363 = vld [vmem:[%s340 + $0x108] sm:$0xff]
        %v364 = vld [vmem:[%s340 + $0x110] sm:$0xff]
        %v365 = vld [vmem:[%s340 + $0x120] sm:$0xff]
        %v366 = vld [vmem:[%s340 + $0x128] sm:$0xff]
        %v367 = vld [vmem:[%s340 + $0x138] sm:$0xff]
        %v368 = vld [vmem:[%s340 + $0x140] sm:$0xff]
        %v369 = vld [vmem:[%s340 + $0x150] sm:$0xff]
        %v370 = vld [vmem:[%s340 + $0x158] sm:$0xff]
        %v371 = vld [vmem:[%s340 + $0x168] sm:$0xff]
        %v372 = vld [vmem:[%s340 + $0x170] sm:$0xff]
        %v373 = vld [vmem:[%s340 + $0x1] sm:$0xff]
        %v374 = vld [vmem:[%s340 + $0x9] sm:$0xff]
        %v375 = vld [vmem:[%s340 + $0x19] sm:$0xff]
        %v376 = vld [vmem:[%s340 + $0x21] sm:$0xff]
        %v377 = vld [vmem:[%s340 + $0x31] sm:$0xff]
        %v378 = vld [vmem:[%s340 + $0x39] sm:$0xff]
        %v379 = vld [vmem:[%s340 + $0x49] sm:$0xff]
        %v380 = vld [vmem:[%s340 + $0x51] sm:$0xff]
        %v381 = vld [vmem:[%s340 + $0x61] sm:$0xff]
        %v382 = vld [vmem:[%s340 + $0x69] sm:$0xff]
        %v383 = vld [vmem:[%s340 + $0x79] sm:$0xff]
        %v384 = vld [vmem:[%s340 + $0x81] sm:$0xff]
        %v385 = vld [vmem:[%s340 + $0x91] sm:$0xff]
        %v386 = vld [vmem:[%s340 + $0x99] sm:$0xff]
        %v387 = vld [vmem:[%s340 + $0xa9] sm:$0xff]
        %v388 = vld [vmem:[%s340 + $0xb1] sm:$0xff]
        %v389 = vld [vmem:[%s340 + $0xc1] sm:$0xff]
        %v390 = vld [vmem:[%s340 + $0xc9] sm:$0xff]
        %v391 = vld [vmem:[%s340 + $0xd9] sm:$0xff]
        %v392 = vld [vmem:[%s340 + $0xe1] sm:$0xff]
        %v393 = vld [vmem:[%s340 + $0xf1] sm:$0xff]
        %v394 = vld [vmem:[%s340 + $0xf9] sm:$0xff]
        %v395 = vld [vmem:[%s340 + $0x109] sm:$0xff]
        %v396 = vld [vmem:[%s340 + $0x111] sm:$0xff]
        %v397 = vld [vmem:[%s340 + $0x121] sm:$0xff]
        %v398 = vld [vmem:[%s340 + $0x129] sm:$0xff]
        %v399 = vld [vmem:[%s340 + $0x139] sm:$0xff]
        %v400 = vld [vmem:[%s340 + $0x141] sm:$0xff]
        %v401 = vld [vmem:[%s340 + $0x151] sm:$0xff]
        %v402 = vld [vmem:[%s340 + $0x159] sm:$0xff]
        %v403 = vld [vmem:[%s340 + $0x169] sm:$0xff]
        %v404 = vld [vmem:[%s340 + $0x171] sm:$0xff]
        %v405 = vld [vmem:[%s340 + $0x2] sm:$0xff]
        %v406 = vld [vmem:[%s340 + $0xa] sm:$0xff]
        %v407 = vld [vmem:[%s340 + $0x1a] sm:$0xff]
        %v408 = vld [vmem:[%s340 + $0x22] sm:$0xff]
        %v409 = vld [vmem:[%s340 + $0x32] sm:$0xff]
        %v410 = vld [vmem:[%s340 + $0x3a] sm:$0xff]
        %v411 = vld [vmem:[%s340 + $0x4a] sm:$0xff]
        %v412 = vld [vmem:[%s340 + $0x52] sm:$0xff]
        %v413 = vld [vmem:[%s340 + $0x62] sm:$0xff]
        %v414 = vld [vmem:[%s340 + $0x6a] sm:$0xff]
        %v415 = vld [vmem:[%s340 + $0x7a] sm:$0xff]
        %v416 = vld [vmem:[%s340 + $0x82] sm:$0xff]
        %v417 = vld [vmem:[%s340 + $0x92] sm:$0xff]
        %v418 = vld [vmem:[%s340 + $0x9a] sm:$0xff]
        %v419 = vld [vmem:[%s340 + $0xaa] sm:$0xff]
        %v420 = vld [vmem:[%s340 + $0xb2] sm:$0xff]
        %v421 = vld [vmem:[%s340 + $0xc2] sm:$0xff]
        %v422 = vld [vmem:[%s340 + $0xca] sm:$0xff]
        %v423 = vld [vmem:[%s340 + $0xda] sm:$0xff]
        %v424 = vld [vmem:[%s340 + $0xe2] sm:$0xff]
        %v425 = vld [vmem:[%s340 + $0xf2] sm:$0xff]
        %v426 = vld [vmem:[%s340 + $0xfa] sm:$0xff]
        %v427 = vld [vmem:[%s340 + $0x10a] sm:$0xff]
        %v428 = vld [vmem:[%s340 + $0x112] sm:$0xff]
        %v429 = vld [vmem:[%s340 + $0x122] sm:$0xff]
        %v430 = vld [vmem:[%s340 + $0x12a] sm:$0xff]
        %v431 = vld [vmem:[%s340 + $0x13a] sm:$0xff]
        %v432 = vld [vmem:[%s340 + $0x142] sm:$0xff]
        %v433 = vld [vmem:[%s340 + $0x152] sm:$0xff]
        %v434 = vld [vmem:[%s340 + $0x15a] sm:$0xff]
        %v435 = vld [vmem:[%s340 + $0x16a] sm:$0xff]
        %v436 = vld [vmem:[%s340 + $0x172] sm:$0xff]
        %s437 = scalar_lea.vmem %s238, 48
        %v438 = vld [vmem:[%s437] sm:$0xff]
        %v439 = vld [vmem:[%s437 + $0x8] sm:$0xff]
        %v440 = vld [vmem:[%s437 + $0x18] sm:$0xff]
        %v441 = vld [vmem:[%s437 + $0x20] sm:$0xff]
        %v442 = vld [vmem:[%s437 + $0x30] sm:$0xff]
        %v443 = vld [vmem:[%s437 + $0x38] sm:$0xff]
        %v444 = vld [vmem:[%s437 + $0x48] sm:$0xff]
        %v445 = vld [vmem:[%s437 + $0x50] sm:$0xff]
        %v446 = vld [vmem:[%s437 + $0x60] sm:$0xff]
        %v447 = vld [vmem:[%s437 + $0x68] sm:$0xff]
        %v448 = vld [vmem:[%s437 + $0x78] sm:$0xff]
        %v449 = vld [vmem:[%s437 + $0x80] sm:$0xff]
        %v450 = vld [vmem:[%s437 + $0x90] sm:$0xff]
        %v451 = vld [vmem:[%s437 + $0x98] sm:$0xff]
        %v452 = vld [vmem:[%s437 + $0xa8] sm:$0xff]
        %v453 = vld [vmem:[%s437 + $0xb0] sm:$0xff]
        %v454 = vld [vmem:[%s437 + $0xc0] sm:$0xff]
        %v455 = vld [vmem:[%s437 + $0xc8] sm:$0xff]
        %v456 = vld [vmem:[%s437 + $0xd8] sm:$0xff]
        %v457 = vld [vmem:[%s437 + $0xe0] sm:$0xff]
        %v458 = vld [vmem:[%s437 + $0xf0] sm:$0xff]
        %v459 = vld [vmem:[%s437 + $0xf8] sm:$0xff]
        %v460 = vld [vmem:[%s437 + $0x108] sm:$0xff]
        %v461 = vld [vmem:[%s437 + $0x110] sm:$0xff]
        %v462 = vld [vmem:[%s437 + $0x120] sm:$0xff]
        %v463 = vld [vmem:[%s437 + $0x128] sm:$0xff]
        %v464 = vld [vmem:[%s437 + $0x138] sm:$0xff]
        %v465 = vld [vmem:[%s437 + $0x140] sm:$0xff]
        %v466 = vld [vmem:[%s437 + $0x150] sm:$0xff]
        %v467 = vld [vmem:[%s437 + $0x158] sm:$0xff]
        %v468 = vld [vmem:[%s437 + $0x168] sm:$0xff]
        %v469 = vld [vmem:[%s437 + $0x170] sm:$0xff]
        %v470 = vld [vmem:[%s437 + $0x1] sm:$0xff]
        %v471 = vld [vmem:[%s437 + $0x9] sm:$0xff]
        %v472 = vld [vmem:[%s437 + $0x19] sm:$0xff]
        %v473 = vld [vmem:[%s437 + $0x21] sm:$0xff]
        %v474 = vld [vmem:[%s437 + $0x31] sm:$0xff]
        %v475 = vld [vmem:[%s437 + $0x39] sm:$0xff]
        %v476 = vld [vmem:[%s437 + $0x49] sm:$0xff]
        %v477 = vld [vmem:[%s437 + $0x51] sm:$0xff]
        %v478 = vld [vmem:[%s437 + $0x61] sm:$0xff]
        %v479 = vld [vmem:[%s437 + $0x69] sm:$0xff]
        %v480 = vld [vmem:[%s437 + $0x79] sm:$0xff]
        %v481 = vld [vmem:[%s437 + $0x81] sm:$0xff]
        %v482 = vld [vmem:[%s437 + $0x91] sm:$0xff]
        %v483 = vld [vmem:[%s437 + $0x99] sm:$0xff]
        %v484 = vld [vmem:[%s437 + $0xa9] sm:$0xff]
        %v485 = vld [vmem:[%s437 + $0xb1] sm:$0xff]
        %v486 = vld [vmem:[%s437 + $0xc1] sm:$0xff]
        %v487 = vld [vmem:[%s437 + $0xc9] sm:$0xff]
        %v488 = vld [vmem:[%s437 + $0xd9] sm:$0xff]
        %v489 = vld [vmem:[%s437 + $0xe1] sm:$0xff]
        %v490 = vld [vmem:[%s437 + $0xf1] sm:$0xff]
        %v491 = vld [vmem:[%s437 + $0xf9] sm:$0xff]
        %v492 = vld [vmem:[%s437 + $0x109] sm:$0xff]
        %v493 = vld [vmem:[%s437 + $0x111] sm:$0xff]
        %v494 = vld [vmem:[%s437 + $0x121] sm:$0xff]
        %v495 = vld [vmem:[%s437 + $0x129] sm:$0xff]
        %v496 = vld [vmem:[%s437 + $0x139] sm:$0xff]
        %v497 = vld [vmem:[%s437 + $0x141] sm:$0xff]
        %v498 = vld [vmem:[%s437 + $0x151] sm:$0xff]
        %v499 = vld [vmem:[%s437 + $0x159] sm:$0xff]
        %v500 = vld [vmem:[%s437 + $0x169] sm:$0xff]
        %v501 = vld [vmem:[%s437 + $0x171] sm:$0xff]
        %v502 = vld [vmem:[%s437 + $0x2] sm:$0xff]
        %v503 = vld [vmem:[%s437 + $0xa] sm:$0xff]
        %v504 = vld [vmem:[%s437 + $0x1a] sm:$0xff]
        %v505 = vld [vmem:[%s437 + $0x22] sm:$0xff]
        %v506 = vld [vmem:[%s437 + $0x32] sm:$0xff]
        %v507 = vld [vmem:[%s437 + $0x3a] sm:$0xff]
        %v508 = vld [vmem:[%s437 + $0x4a] sm:$0xff]
        %v509 = vld [vmem:[%s437 + $0x52] sm:$0xff]
        %v510 = vld [vmem:[%s437 + $0x62] sm:$0xff]
        %v511 = vld [vmem:[%s437 + $0x6a] sm:$0xff]
        %v512 = vld [vmem:[%s437 + $0x7a] sm:$0xff]
        %v513 = vld [vmem:[%s437 + $0x82] sm:$0xff]
        %v514 = vld [vmem:[%s437 + $0x92] sm:$0xff]
        %v515 = vld [vmem:[%s437 + $0x9a] sm:$0xff]
        %v516 = vld [vmem:[%s437 + $0xaa] sm:$0xff]
        %v517 = vld [vmem:[%s437 + $0xb2] sm:$0xff]
        %v518 = vld [vmem:[%s437 + $0xc2] sm:$0xff]
        %v519 = vld [vmem:[%s437 + $0xca] sm:$0xff]
        %v520 = vld [vmem:[%s437 + $0xda] sm:$0xff]
        %v521 = vld [vmem:[%s437 + $0xe2] sm:$0xff]
        %v522 = vld [vmem:[%s437 + $0xf2] sm:$0xff]
        %v523 = vld [vmem:[%s437 + $0xfa] sm:$0xff]
        %v524 = vld [vmem:[%s437 + $0x10a] sm:$0xff]
        %v525 = vld [vmem:[%s437 + $0x112] sm:$0xff]
        %v526 = vld [vmem:[%s437 + $0x122] sm:$0xff]
        %v527 = vld [vmem:[%s437 + $0x12a] sm:$0xff]
        %v528 = vld [vmem:[%s437 + $0x13a] sm:$0xff]
        %v529 = vld [vmem:[%s437 + $0x142] sm:$0xff]
        %v530 = vld [vmem:[%s437 + $0x152] sm:$0xff]
        %v531 = vld [vmem:[%s437 + $0x15a] sm:$0xff]
        %v532 = vld [vmem:[%s437 + $0x16a] sm:$0xff]
        %v533 = vld [vmem:[%s437 + $0x172] sm:$0xff]
        %566 = vrot.lane.b32.xlu0 %v276, 4
        %v567 = vpop.permute.xlu0 %566
        %568 = vrot.lane.b32.xlu0 %v277, 4
        %v569 = vpop.permute.xlu0 %568
        %570 = vrot.lane.b32.xlu0 %v278, 4
        %v571 = vpop.permute.xlu0 %570
        %572 = vrot.lane.b32.xlu0 %v279, 4
        %v573 = vpop.permute.xlu0 %572
        %574 = vrot.lane.b32.xlu0 %v280, 4
        %v575 = vpop.permute.xlu0 %574
        %576 = vrot.lane.b32.xlu0 %v281, 4
        %v577 = vpop.permute.xlu0 %576
        %578 = vrot.lane.b32.xlu0 %v282, 4
        %v579 = vpop.permute.xlu0 %578
        %580 = vrot.lane.b32.xlu0 %v283, 4
        %v581 = vpop.permute.xlu0 %580
        %582 = vrot.lane.b32.xlu0 %v284, 4
        %v583 = vpop.permute.xlu0 %582
        %584 = vrot.lane.b32.xlu0 %v285, 4
        %v585 = vpop.permute.xlu0 %584
        %586 = vrot.lane.b32.xlu0 %v286, 4
        %v587 = vpop.permute.xlu0 %586
        %588 = vrot.lane.b32.xlu0 %v287, 4
        %v589 = vpop.permute.xlu0 %588
        %590 = vrot.lane.b32.xlu0 %v288, 4
        %v591 = vpop.permute.xlu0 %590
        %592 = vrot.lane.b32.xlu0 %v289, 4
        %v593 = vpop.permute.xlu0 %592
        %594 = vrot.lane.b32.xlu0 %v290, 4
        %v595 = vpop.permute.xlu0 %594
        %596 = vrot.lane.b32.xlu0 %v291, 4
        %v597 = vpop.permute.xlu0 %596
        %598 = vrot.lane.b32.xlu0 %v292, 4
        %v599 = vpop.permute.xlu0 %598
        %600 = vrot.lane.b32.xlu0 %v293, 4
        %v601 = vpop.permute.xlu0 %600
        %602 = vrot.lane.b32.xlu0 %v294, 4
        %v603 = vpop.permute.xlu0 %602
        %604 = vrot.lane.b32.xlu0 %v295, 4
        %v605 = vpop.permute.xlu0 %604
        %606 = vrot.lane.b32.xlu0 %v296, 4
        %v607 = vpop.permute.xlu0 %606
        %608 = vrot.lane.b32.xlu0 %v297, 4
        %v609 = vpop.permute.xlu0 %608
        %610 = vrot.lane.b32.xlu0 %v298, 4
        %v611 = vpop.permute.xlu0 %610
        %612 = vrot.lane.b32.xlu0 %v299, 4
        %v613 = vpop.permute.xlu0 %612
        %614 = vrot.lane.b32.xlu0 %v300, 4
        %v615 = vpop.permute.xlu0 %614
        %616 = vrot.lane.b32.xlu0 %v301, 4
        %v617 = vpop.permute.xlu0 %616
        %618 = vrot.lane.b32.xlu0 %v302, 4
        %v619 = vpop.permute.xlu0 %618
        %620 = vrot.lane.b32.xlu0 %v303, 4
        %v621 = vpop.permute.xlu0 %620
        %622 = vrot.lane.b32.xlu0 %v304, 4
        %v623 = vpop.permute.xlu0 %622
        %624 = vrot.lane.b32.xlu0 %v305, 4
        %v625 = vpop.permute.xlu0 %624
        %626 = vrot.lane.b32.xlu0 %v306, 4
        %v627 = vpop.permute.xlu0 %626
        %628 = vrot.lane.b32.xlu0 %v307, 4
        %v629 = vpop.permute.xlu0 %628
        %694 = vrot.lane.b32.xlu0 %v308, 8
        %v695 = vpop.permute.xlu0 %694
        %696 = vrot.lane.b32.xlu0 %v309, 8
        %v697 = vpop.permute.xlu0 %696
        %698 = vrot.lane.b32.xlu0 %v310, 8
        %v699 = vpop.permute.xlu0 %698
        %700 = vrot.lane.b32.xlu0 %v311, 8
        %v701 = vpop.permute.xlu0 %700
        %702 = vrot.lane.b32.xlu0 %v312, 8
        %v703 = vpop.permute.xlu0 %702
        %704 = vrot.lane.b32.xlu0 %v313, 8
        %v705 = vpop.permute.xlu0 %704
        %706 = vrot.lane.b32.xlu0 %v314, 8
        %v707 = vpop.permute.xlu0 %706
        %708 = vrot.lane.b32.xlu0 %v315, 8
        %v709 = vpop.permute.xlu0 %708
        %710 = vrot.lane.b32.xlu0 %v316, 8
        %v711 = vpop.permute.xlu0 %710
        %712 = vrot.lane.b32.xlu0 %v317, 8
        %v713 = vpop.permute.xlu0 %712
        %714 = vrot.lane.b32.xlu0 %v318, 8
        %v715 = vpop.permute.xlu0 %714
        %716 = vrot.lane.b32.xlu0 %v319, 8
        %v717 = vpop.permute.xlu0 %716
        %718 = vrot.lane.b32.xlu0 %v320, 8
        %v719 = vpop.permute.xlu0 %718
        %720 = vrot.lane.b32.xlu0 %v321, 8
        %v721 = vpop.permute.xlu0 %720
        %722 = vrot.lane.b32.xlu0 %v322, 8
        %v723 = vpop.permute.xlu0 %722
        %724 = vrot.lane.b32.xlu0 %v323, 8
        %v725 = vpop.permute.xlu0 %724
        %726 = vrot.lane.b32.xlu0 %v324, 8
        %v727 = vpop.permute.xlu0 %726
        %728 = vrot.lane.b32.xlu0 %v325, 8
        %v729 = vpop.permute.xlu0 %728
        %730 = vrot.lane.b32.xlu0 %v326, 8
        %v731 = vpop.permute.xlu0 %730
        %732 = vrot.lane.b32.xlu0 %v327, 8
        %v733 = vpop.permute.xlu0 %732
        %734 = vrot.lane.b32.xlu0 %v328, 8
        %v735 = vpop.permute.xlu0 %734
        %736 = vrot.lane.b32.xlu0 %v329, 8
        %v737 = vpop.permute.xlu0 %736
        %738 = vrot.lane.b32.xlu0 %v330, 8
        %v739 = vpop.permute.xlu0 %738
        %740 = vrot.lane.b32.xlu0 %v331, 8
        %v741 = vpop.permute.xlu0 %740
        %742 = vrot.lane.b32.xlu0 %v332, 8
        %v743 = vpop.permute.xlu0 %742
        %744 = vrot.lane.b32.xlu0 %v333, 8
        %v745 = vpop.permute.xlu0 %744
        %746 = vrot.lane.b32.xlu0 %v334, 8
        %v747 = vpop.permute.xlu0 %746
        %748 = vrot.lane.b32.xlu0 %v335, 8
        %v749 = vpop.permute.xlu0 %748
        %750 = vrot.lane.b32.xlu0 %v336, 8
        %v751 = vpop.permute.xlu0 %750
        %752 = vrot.lane.b32.xlu0 %v337, 8
        %v753 = vpop.permute.xlu0 %752
        %754 = vrot.lane.b32.xlu0 %v338, 8
        %v755 = vpop.permute.xlu0 %754
        %756 = vrot.lane.b32.xlu0 %v339, 8
        %v757 = vpop.permute.xlu0 %756
        %822 = vrot.lane.b32.xlu0 %v341, 12
        %v823 = vpop.permute.xlu0 %822
        %824 = vrot.lane.b32.xlu0 %v342, 12
        %v825 = vpop.permute.xlu0 %824
        %826 = vrot.lane.b32.xlu0 %v343, 12
        %v827 = vpop.permute.xlu0 %826
        %828 = vrot.lane.b32.xlu0 %v344, 12
        %v829 = vpop.permute.xlu0 %828
        %830 = vrot.lane.b32.xlu0 %v345, 12
        %v831 = vpop.permute.xlu0 %830
        %832 = vrot.lane.b32.xlu0 %v346, 12
        %v833 = vpop.permute.xlu0 %832
        %834 = vrot.lane.b32.xlu0 %v347, 12
        %v835 = vpop.permute.xlu0 %834
        %836 = vrot.lane.b32.xlu0 %v348, 12
        %v837 = vpop.permute.xlu0 %836
        %838 = vrot.lane.b32.xlu0 %v349, 12
        %v839 = vpop.permute.xlu0 %838
        %840 = vrot.lane.b32.xlu0 %v350, 12
        %v841 = vpop.permute.xlu0 %840
        %842 = vrot.lane.b32.xlu0 %v351, 12
        %v843 = vpop.permute.xlu0 %842
        %844 = vrot.lane.b32.xlu0 %v352, 12
        %v845 = vpop.permute.xlu0 %844
        %846 = vrot.lane.b32.xlu0 %v353, 12
        %v847 = vpop.permute.xlu0 %846
        %848 = vrot.lane.b32.xlu0 %v354, 12
        %v849 = vpop.permute.xlu0 %848
        %850 = vrot.lane.b32.xlu0 %v355, 12
        %v851 = vpop.permute.xlu0 %850
        %852 = vrot.lane.b32.xlu0 %v356, 12
        %v853 = vpop.permute.xlu0 %852
        %854 = vrot.lane.b32.xlu0 %v357, 12
        %v855 = vpop.permute.xlu0 %854
        %856 = vrot.lane.b32.xlu0 %v358, 12
        %v857 = vpop.permute.xlu0 %856
        %858 = vrot.lane.b32.xlu0 %v359, 12
        %v859 = vpop.permute.xlu0 %858
        %860 = vrot.lane.b32.xlu0 %v360, 12
        %v861 = vpop.permute.xlu0 %860
        %862 = vrot.lane.b32.xlu0 %v361, 12
        %v863 = vpop.permute.xlu0 %862
        %864 = vrot.lane.b32.xlu0 %v362, 12
        %v865 = vpop.permute.xlu0 %864
        %866 = vrot.lane.b32.xlu0 %v363, 12
        %v867 = vpop.permute.xlu0 %866
        %868 = vrot.lane.b32.xlu0 %v364, 12
        %v869 = vpop.permute.xlu0 %868
        %870 = vrot.lane.b32.xlu0 %v365, 12
        %v871 = vpop.permute.xlu0 %870
        %872 = vrot.lane.b32.xlu0 %v366, 12
        %v873 = vpop.permute.xlu0 %872
        %874 = vrot.lane.b32.xlu0 %v367, 12
        %v875 = vpop.permute.xlu0 %874
        %876 = vrot.lane.b32.xlu0 %v368, 12
        %v877 = vpop.permute.xlu0 %876
        %878 = vrot.lane.b32.xlu0 %v369, 12
        %v879 = vpop.permute.xlu0 %878
        %880 = vrot.lane.b32.xlu0 %v370, 12
        %v881 = vpop.permute.xlu0 %880
        %882 = vrot.lane.b32.xlu0 %v371, 12
        %v883 = vpop.permute.xlu0 %882
        %884 = vrot.lane.b32.xlu0 %v372, 12
        %v885 = vpop.permute.xlu0 %884
        %950 = vrot.lane.b32.xlu0 %v373, 16
        %v951 = vpop.permute.xlu0 %950
        %952 = vrot.lane.b32.xlu0 %v374, 16
        %v953 = vpop.permute.xlu0 %952
        %954 = vrot.lane.b32.xlu0 %v375, 16
        %v955 = vpop.permute.xlu0 %954
        %956 = vrot.lane.b32.xlu0 %v376, 16
        %v957 = vpop.permute.xlu0 %956
        %958 = vrot.lane.b32.xlu0 %v377, 16
        %v959 = vpop.permute.xlu0 %958
        %960 = vrot.lane.b32.xlu0 %v378, 16
        %v961 = vpop.permute.xlu0 %960
        %962 = vrot.lane.b32.xlu0 %v379, 16
        %v963 = vpop.permute.xlu0 %962
        %964 = vrot.lane.b32.xlu0 %v380, 16
        %v965 = vpop.permute.xlu0 %964
        %966 = vrot.lane.b32.xlu0 %v381, 16
        %v967 = vpop.permute.xlu0 %966
        %968 = vrot.lane.b32.xlu0 %v382, 16
        %v969 = vpop.permute.xlu0 %968
        %970 = vrot.lane.b32.xlu0 %v383, 16
        %v971 = vpop.permute.xlu0 %970
        %972 = vrot.lane.b32.xlu0 %v384, 16
        %v973 = vpop.permute.xlu0 %972
        %974 = vrot.lane.b32.xlu0 %v385, 16
        %v975 = vpop.permute.xlu0 %974
        %976 = vrot.lane.b32.xlu0 %v386, 16
        %v977 = vpop.permute.xlu0 %976
        %978 = vrot.lane.b32.xlu0 %v387, 16
        %v979 = vpop.permute.xlu0 %978
        %980 = vrot.lane.b32.xlu0 %v388, 16
        %v981 = vpop.permute.xlu0 %980
        %982 = vrot.lane.b32.xlu0 %v389, 16
        %v983 = vpop.permute.xlu0 %982
        %984 = vrot.lane.b32.xlu0 %v390, 16
        %v985 = vpop.permute.xlu0 %984
        %986 = vrot.lane.b32.xlu0 %v391, 16
        %v987 = vpop.permute.xlu0 %986
        %988 = vrot.lane.b32.xlu0 %v392, 16
        %v989 = vpop.permute.xlu0 %988
        %990 = vrot.lane.b32.xlu0 %v393, 16
        %v991 = vpop.permute.xlu0 %990
        %992 = vrot.lane.b32.xlu0 %v394, 16
        %v993 = vpop.permute.xlu0 %992
        %994 = vrot.lane.b32.xlu0 %v395, 16
        %v995 = vpop.permute.xlu0 %994
        %996 = vrot.lane.b32.xlu0 %v396, 16
        %v997 = vpop.permute.xlu0 %996
        %998 = vrot.lane.b32.xlu0 %v397, 16
        %v999 = vpop.permute.xlu0 %998
        %1000 = vrot.lane.b32.xlu0 %v398, 16
        %v1001 = vpop.permute.xlu0 %1000
        %1002 = vrot.lane.b32.xlu0 %v399, 16
        %v1003 = vpop.permute.xlu0 %1002
        %1004 = vrot.lane.b32.xlu0 %v400, 16
        %v1005 = vpop.permute.xlu0 %1004
        %1006 = vrot.lane.b32.xlu0 %v401, 16
        %v1007 = vpop.permute.xlu0 %1006
        %1008 = vrot.lane.b32.xlu0 %v402, 16
        %v1009 = vpop.permute.xlu0 %1008
        %1010 = vrot.lane.b32.xlu0 %v403, 16
        %v1011 = vpop.permute.xlu0 %1010
        %1012 = vrot.lane.b32.xlu0 %v404, 16
        %v1013 = vpop.permute.xlu0 %1012
        %1078 = vrot.lane.b32.xlu0 %v405, 20
        %v1079 = vpop.permute.xlu0 %1078
        %1080 = vrot.lane.b32.xlu0 %v406, 20
        %v1081 = vpop.permute.xlu0 %1080
        %1082 = vrot.lane.b32.xlu0 %v407, 20
        %v1083 = vpop.permute.xlu0 %1082
        %1084 = vrot.lane.b32.xlu0 %v408, 20
        %v1085 = vpop.permute.xlu0 %1084
        %1086 = vrot.lane.b32.xlu0 %v409, 20
        %v1087 = vpop.permute.xlu0 %1086
        %1088 = vrot.lane.b32.xlu0 %v410, 20
        %v1089 = vpop.permute.xlu0 %1088
        %1090 = vrot.lane.b32.xlu0 %v411, 20
        %v1091 = vpop.permute.xlu0 %1090
        %1092 = vrot.lane.b32.xlu0 %v412, 20
        %v1093 = vpop.permute.xlu0 %1092
        %1094 = vrot.lane.b32.xlu0 %v413, 20
        %v1095 = vpop.permute.xlu0 %1094
        %1096 = vrot.lane.b32.xlu0 %v414, 20
        %v1097 = vpop.permute.xlu0 %1096
        %1098 = vrot.lane.b32.xlu0 %v415, 20
        %v1099 = vpop.permute.xlu0 %1098
        %1100 = vrot.lane.b32.xlu0 %v416, 20
        %v1101 = vpop.permute.xlu0 %1100
        %1102 = vrot.lane.b32.xlu0 %v417, 20
        %v1103 = vpop.permute.xlu0 %1102
        %1104 = vrot.lane.b32.xlu0 %v418, 20
        %v1105 = vpop.permute.xlu0 %1104
        %1106 = vrot.lane.b32.xlu0 %v419, 20
        %v1107 = vpop.permute.xlu0 %1106
        %1108 = vrot.lane.b32.xlu0 %v420, 20
        %v1109 = vpop.permute.xlu0 %1108
        %1110 = vrot.lane.b32.xlu0 %v421, 20
        %v1111 = vpop.permute.xlu0 %1110
        %1112 = vrot.lane.b32.xlu0 %v422, 20
        %v1113 = vpop.permute.xlu0 %1112
        %1114 = vrot.lane.b32.xlu0 %v423, 20
        %v1115 = vpop.permute.xlu0 %1114
        %1116 = vrot.lane.b32.xlu0 %v424, 20
        %v1117 = vpop.permute.xlu0 %1116
        %1118 = vrot.lane.b32.xlu0 %v425, 20
        %v1119 = vpop.permute.xlu0 %1118
        %1120 = vrot.lane.b32.xlu0 %v426, 20
        %v1121 = vpop.permute.xlu0 %1120
        %1122 = vrot.lane.b32.xlu0 %v427, 20
        %v1123 = vpop.permute.xlu0 %1122
        %1124 = vrot.lane.b32.xlu0 %v428, 20
        %v1125 = vpop.permute.xlu0 %1124
        %1126 = vrot.lane.b32.xlu0 %v429, 20
        %v1127 = vpop.permute.xlu0 %1126
        %1128 = vrot.lane.b32.xlu0 %v430, 20
        %v1129 = vpop.permute.xlu0 %1128
        %1130 = vrot.lane.b32.xlu0 %v431, 20
        %v1131 = vpop.permute.xlu0 %1130
        %1132 = vrot.lane.b32.xlu0 %v432, 20
        %v1133 = vpop.permute.xlu0 %1132
        %1134 = vrot.lane.b32.xlu0 %v433, 20
        %v1135 = vpop.permute.xlu0 %1134
        %1136 = vrot.lane.b32.xlu0 %v434, 20
        %v1137 = vpop.permute.xlu0 %1136
        %1138 = vrot.lane.b32.xlu0 %v435, 20
        %v1139 = vpop.permute.xlu0 %1138
        %1140 = vrot.lane.b32.xlu0 %v436, 20
        %v1141 = vpop.permute.xlu0 %1140
        %1206 = vrot.lane.b32.xlu0 %v438, 24
        %v1207 = vpop.permute.xlu0 %1206
        %1208 = vrot.lane.b32.xlu0 %v439, 24
        %v1209 = vpop.permute.xlu0 %1208
        %1210 = vrot.lane.b32.xlu0 %v440, 24
        %v1211 = vpop.permute.xlu0 %1210
        %1212 = vrot.lane.b32.xlu0 %v441, 24
        %v1213 = vpop.permute.xlu0 %1212
        %1214 = vrot.lane.b32.xlu0 %v442, 24
        %v1215 = vpop.permute.xlu0 %1214
        %1216 = vrot.lane.b32.xlu0 %v443, 24
        %v1217 = vpop.permute.xlu0 %1216
        %1218 = vrot.lane.b32.xlu0 %v444, 24
        %v1219 = vpop.permute.xlu0 %1218
        %1220 = vrot.lane.b32.xlu0 %v445, 24
        %v1221 = vpop.permute.xlu0 %1220
        %1222 = vrot.lane.b32.xlu0 %v446, 24
        %v1223 = vpop.permute.xlu0 %1222
        %1224 = vrot.lane.b32.xlu0 %v447, 24
        %v1225 = vpop.permute.xlu0 %1224
        %1226 = vrot.lane.b32.xlu0 %v448, 24
        %v1227 = vpop.permute.xlu0 %1226
        %1228 = vrot.lane.b32.xlu0 %v449, 24
        %v1229 = vpop.permute.xlu0 %1228
        %1230 = vrot.lane.b32.xlu0 %v450, 24
        %v1231 = vpop.permute.xlu0 %1230
        %1232 = vrot.lane.b32.xlu0 %v451, 24
        %v1233 = vpop.permute.xlu0 %1232
        %1234 = vrot.lane.b32.xlu0 %v452, 24
        %v1235 = vpop.permute.xlu0 %1234
        %1236 = vrot.lane.b32.xlu0 %v453, 24
        %v1237 = vpop.permute.xlu0 %1236
        %1238 = vrot.lane.b32.xlu0 %v454, 24
        %v1239 = vpop.permute.xlu0 %1238
        %1240 = vrot.lane.b32.xlu0 %v455, 24
        %v1241 = vpop.permute.xlu0 %1240
        %1242 = vrot.lane.b32.xlu0 %v456, 24
        %v1243 = vpop.permute.xlu0 %1242
        %1244 = vrot.lane.b32.xlu0 %v457, 24
        %v1245 = vpop.permute.xlu0 %1244
        %1246 = vrot.lane.b32.xlu0 %v458, 24
        %v1247 = vpop.permute.xlu0 %1246
        %1248 = vrot.lane.b32.xlu0 %v459, 24
        %v1249 = vpop.permute.xlu0 %1248
        %1250 = vrot.lane.b32.xlu0 %v460, 24
        %v1251 = vpop.permute.xlu0 %1250
        %1252 = vrot.lane.b32.xlu0 %v461, 24
        %v1253 = vpop.permute.xlu0 %1252
        %1254 = vrot.lane.b32.xlu0 %v462, 24
        %v1255 = vpop.permute.xlu0 %1254
        %1256 = vrot.lane.b32.xlu0 %v463, 24
        %v1257 = vpop.permute.xlu0 %1256
        %1258 = vrot.lane.b32.xlu0 %v464, 24
        %v1259 = vpop.permute.xlu0 %1258
        %1260 = vrot.lane.b32.xlu0 %v465, 24
        %v1261 = vpop.permute.xlu0 %1260
        %1262 = vrot.lane.b32.xlu0 %v466, 24
        %v1263 = vpop.permute.xlu0 %1262
        %1264 = vrot.lane.b32.xlu0 %v467, 24
        %v1265 = vpop.permute.xlu0 %1264
        %1266 = vrot.lane.b32.xlu0 %v468, 24
        %v1267 = vpop.permute.xlu0 %1266
        %1268 = vrot.lane.b32.xlu0 %v469, 24
        %v1269 = vpop.permute.xlu0 %1268
        %1334 = vrot.lane.b32.xlu0 %v470, 28
        %v1335 = vpop.permute.xlu0 %1334
        %1336 = vrot.lane.b32.xlu0 %v471, 28
        %v1337 = vpop.permute.xlu0 %1336
        %1338 = vrot.lane.b32.xlu0 %v472, 28
        %v1339 = vpop.permute.xlu0 %1338
        %1340 = vrot.lane.b32.xlu0 %v473, 28
        %v1341 = vpop.permute.xlu0 %1340
        %1342 = vrot.lane.b32.xlu0 %v474, 28
        %v1343 = vpop.permute.xlu0 %1342
        %1344 = vrot.lane.b32.xlu0 %v475, 28
        %v1345 = vpop.permute.xlu0 %1344
        %1346 = vrot.lane.b32.xlu0 %v476, 28
        %v1347 = vpop.permute.xlu0 %1346
        %1348 = vrot.lane.b32.xlu0 %v477, 28
        %v1349 = vpop.permute.xlu0 %1348
        %1350 = vrot.lane.b32.xlu0 %v478, 28
        %v1351 = vpop.permute.xlu0 %1350
        %1352 = vrot.lane.b32.xlu0 %v479, 28
        %v1353 = vpop.permute.xlu0 %1352
        %1354 = vrot.lane.b32.xlu0 %v480, 28
        %v1355 = vpop.permute.xlu0 %1354
        %1356 = vrot.lane.b32.xlu0 %v481, 28
        %v1357 = vpop.permute.xlu0 %1356
        %1358 = vrot.lane.b32.xlu0 %v482, 28
        %v1359 = vpop.permute.xlu0 %1358
        %1360 = vrot.lane.b32.xlu0 %v483, 28
        %v1361 = vpop.permute.xlu0 %1360
        %1362 = vrot.lane.b32.xlu0 %v484, 28
        %v1363 = vpop.permute.xlu0 %1362
        %1364 = vrot.lane.b32.xlu0 %v485, 28
        %v1365 = vpop.permute.xlu0 %1364
        %1366 = vrot.lane.b32.xlu0 %v486, 28
        %v1367 = vpop.permute.xlu0 %1366
        %1368 = vrot.lane.b32.xlu0 %v487, 28
        %v1369 = vpop.permute.xlu0 %1368
        %1370 = vrot.lane.b32.xlu0 %v488, 28
        %v1371 = vpop.permute.xlu0 %1370
        %1372 = vrot.lane.b32.xlu0 %v489, 28
        %v1373 = vpop.permute.xlu0 %1372
        %1374 = vrot.lane.b32.xlu0 %v490, 28
        %v1375 = vpop.permute.xlu0 %1374
        %1376 = vrot.lane.b32.xlu0 %v491, 28
        %v1377 = vpop.permute.xlu0 %1376
        %1378 = vrot.lane.b32.xlu0 %v492, 28
        %v1379 = vpop.permute.xlu0 %1378
        %1380 = vrot.lane.b32.xlu0 %v493, 28
        %v1381 = vpop.permute.xlu0 %1380
        %1382 = vrot.lane.b32.xlu0 %v494, 28
        %v1383 = vpop.permute.xlu0 %1382
        %1384 = vrot.lane.b32.xlu0 %v495, 28
        %v1385 = vpop.permute.xlu0 %1384
        %1386 = vrot.lane.b32.xlu0 %v496, 28
        %v1387 = vpop.permute.xlu0 %1386
        %1388 = vrot.lane.b32.xlu0 %v497, 28
        %v1389 = vpop.permute.xlu0 %1388
        %1390 = vrot.lane.b32.xlu0 %v498, 28
        %v1391 = vpop.permute.xlu0 %1390
        %1392 = vrot.lane.b32.xlu0 %v499, 28
        %v1393 = vpop.permute.xlu0 %1392
        %1394 = vrot.lane.b32.xlu0 %v500, 28
        %v1395 = vpop.permute.xlu0 %1394
        %1396 = vrot.lane.b32.xlu0 %v501, 28
        %v1397 = vpop.permute.xlu0 %1396
        %1462 = vrot.lane.b32.xlu0 %v502, 32
        %v1463 = vpop.permute.xlu0 %1462
        %1464 = vrot.lane.b32.xlu0 %v503, 32
        %v1465 = vpop.permute.xlu0 %1464
        %1466 = vrot.lane.b32.xlu0 %v504, 32
        %v1467 = vpop.permute.xlu0 %1466
        %1468 = vrot.lane.b32.xlu0 %v505, 32
        %v1469 = vpop.permute.xlu0 %1468
        %1470 = vrot.lane.b32.xlu0 %v506, 32
        %v1471 = vpop.permute.xlu0 %1470
        %1472 = vrot.lane.b32.xlu0 %v507, 32
        %v1473 = vpop.permute.xlu0 %1472
        %1474 = vrot.lane.b32.xlu0 %v508, 32
        %v1475 = vpop.permute.xlu0 %1474
        %1476 = vrot.lane.b32.xlu0 %v509, 32
        %v1477 = vpop.permute.xlu0 %1476
        %1478 = vrot.lane.b32.xlu0 %v510, 32
        %v1479 = vpop.permute.xlu0 %1478
        %1480 = vrot.lane.b32.xlu0 %v511, 32
        %v1481 = vpop.permute.xlu0 %1480
        %1482 = vrot.lane.b32.xlu0 %v512, 32
        %v1483 = vpop.permute.xlu0 %1482
        %1484 = vrot.lane.b32.xlu0 %v513, 32
        %v1485 = vpop.permute.xlu0 %1484
        %1486 = vrot.lane.b32.xlu0 %v514, 32
        %v1487 = vpop.permute.xlu0 %1486
        %1488 = vrot.lane.b32.xlu0 %v515, 32
        %v1489 = vpop.permute.xlu0 %1488
        %1490 = vrot.lane.b32.xlu0 %v516, 32
        %v1491 = vpop.permute.xlu0 %1490
        %1492 = vrot.lane.b32.xlu0 %v517, 32
        %v1493 = vpop.permute.xlu0 %1492
        %1494 = vrot.lane.b32.xlu0 %v518, 32
        %v1495 = vpop.permute.xlu0 %1494
        %1496 = vrot.lane.b32.xlu0 %v519, 32
        %v1497 = vpop.permute.xlu0 %1496
        %1498 = vrot.lane.b32.xlu0 %v520, 32
        %v1499 = vpop.permute.xlu0 %1498
        %1500 = vrot.lane.b32.xlu0 %v521, 32
        %v1501 = vpop.permute.xlu0 %1500
        %1502 = vrot.lane.b32.xlu0 %v522, 32
        %v1503 = vpop.permute.xlu0 %1502
        %1504 = vrot.lane.b32.xlu0 %v523, 32
        %v1505 = vpop.permute.xlu0 %1504
        %1506 = vrot.lane.b32.xlu0 %v524, 32
        %v1507 = vpop.permute.xlu0 %1506
        %1508 = vrot.lane.b32.xlu0 %v525, 32
        %v1509 = vpop.permute.xlu0 %1508
        %1510 = vrot.lane.b32.xlu0 %v526, 32
        %v1511 = vpop.permute.xlu0 %1510
        %1512 = vrot.lane.b32.xlu0 %v527, 32
        %v1513 = vpop.permute.xlu0 %1512
        %1514 = vrot.lane.b32.xlu0 %v528, 32
        %v1515 = vpop.permute.xlu0 %1514
        %1516 = vrot.lane.b32.xlu0 %v529, 32
        %v1517 = vpop.permute.xlu0 %1516
        %1518 = vrot.lane.b32.xlu0 %v530, 32
        %v1519 = vpop.permute.xlu0 %1518
        %1520 = vrot.lane.b32.xlu0 %v531, 32
        %v1521 = vpop.permute.xlu0 %1520
        %1522 = vrot.lane.b32.xlu0 %v532, 32
        %v1523 = vpop.permute.xlu0 %1522
        %1524 = vrot.lane.b32.xlu0 %v533, 32
        %v1525 = vpop.permute.xlu0 %1524
        %vm1558 = vcmask 31744
        %v1559 = vsel %vm1558, %v244, %v567
        %v1560 = vsel %vm1558, %v245, %v569
        %v1561 = vsel %vm1558, %v246, %v571
        %v1562 = vsel %vm1558, %v247, %v573
        %v1563 = vsel %vm1558, %v248, %v575
        %v1564 = vsel %vm1558, %v249, %v577
        %v1565 = vsel %vm1558, %v250, %v579
        %v1566 = vsel %vm1558, %v251, %v581
        %v1567 = vsel %vm1558, %v252, %v583
        %v1568 = vsel %vm1558, %v253, %v585
        %v1569 = vsel %vm1558, %v254, %v587
        %v1570 = vsel %vm1558, %v255, %v589
        %v1571 = vsel %vm1558, %v256, %v591
        %v1572 = vsel %vm1558, %v257, %v593
        %v1573 = vsel %vm1558, %v258, %v595
        %v1574 = vsel %vm1558, %v259, %v597
        %v1575 = vsel %vm1558, %v260, %v599
        %v1576 = vsel %vm1558, %v261, %v601
        %v1577 = vsel %vm1558, %v262, %v603
        %v1578 = vsel %vm1558, %v263, %v605
        %v1579 = vsel %vm1558, %v264, %v607
        %v1580 = vsel %vm1558, %v265, %v609
        %v1581 = vsel %vm1558, %v266, %v611
        %v1582 = vsel %vm1558, %v267, %v613
        %v1583 = vsel %vm1558, %v268, %v615
        %v1584 = vsel %vm1558, %v269, %v617
        %v1585 = vsel %vm1558, %v270, %v619
        %v1586 = vsel %vm1558, %v271, %v621
        %v1587 = vsel %vm1558, %v272, %v623
        %v1588 = vsel %vm1558, %v273, %v625
        %v1589 = vsel %vm1558, %v274, %v627
        %v1590 = vsel %vm1558, %v275, %v629
        %vm1591 = vcmask 64512
        %v1592 = vsel %vm1591, %v1559, %v695
        %v1593 = vsel %vm1591, %v1560, %v697
        %v1594 = vsel %vm1591, %v1561, %v699
        %v1595 = vsel %vm1591, %v1562, %v701
        %v1596 = vsel %vm1591, %v1563, %v703
        %v1597 = vsel %vm1591, %v1564, %v705
        %v1598 = vsel %vm1591, %v1565, %v707
        %v1599 = vsel %vm1591, %v1566, %v709
        %v1600 = vsel %vm1591, %v1567, %v711
        %v1601 = vsel %vm1591, %v1568, %v713
        %v1602 = vsel %vm1591, %v1569, %v715
        %v1603 = vsel %vm1591, %v1570, %v717
        %v1604 = vsel %vm1591, %v1571, %v719
        %v1605 = vsel %vm1591, %v1572, %v721
        %v1606 = vsel %vm1591, %v1573, %v723
        %v1607 = vsel %vm1591, %v1574, %v725
        %v1608 = vsel %vm1591, %v1575, %v727
        %v1609 = vsel %vm1591, %v1576, %v729
        %v1610 = vsel %vm1591, %v1577, %v731
        %v1611 = vsel %vm1591, %v1578, %v733
        %v1612 = vsel %vm1591, %v1579, %v735
        %v1613 = vsel %vm1591, %v1580, %v737
        %v1614 = vsel %vm1591, %v1581, %v739
        %v1615 = vsel %vm1591, %v1582, %v741
        %v1616 = vsel %vm1591, %v1583, %v743
        %v1617 = vsel %vm1591, %v1584, %v745
        %v1618 = vsel %vm1591, %v1585, %v747
        %v1619 = vsel %vm1591, %v1586, %v749
        %v1620 = vsel %vm1591, %v1587, %v751
        %v1621 = vsel %vm1591, %v1588, %v753
        %v1622 = vsel %vm1591, %v1589, %v755
        %v1623 = vsel %vm1591, %v1590, %v757
        %vm1624 = vcmask 97280
        %v1625 = vsel %vm1624, %v1592, %v823
        %v1626 = vsel %vm1624, %v1593, %v825
        %v1627 = vsel %vm1624, %v1594, %v827
        %v1628 = vsel %vm1624, %v1595, %v829
        %v1629 = vsel %vm1624, %v1596, %v831
        %v1630 = vsel %vm1624, %v1597, %v833
        %v1631 = vsel %vm1624, %v1598, %v835
        %v1632 = vsel %vm1624, %v1599, %v837
        %v1633 = vsel %vm1624, %v1600, %v839
        %v1634 = vsel %vm1624, %v1601, %v841
        %v1635 = vsel %vm1624, %v1602, %v843
        %v1636 = vsel %vm1624, %v1603, %v845
        %v1637 = vsel %vm1624, %v1604, %v847
        %v1638 = vsel %vm1624, %v1605, %v849
        %v1639 = vsel %vm1624, %v1606, %v851
        %v1640 = vsel %vm1624, %v1607, %v853
        %v1641 = vsel %vm1624, %v1608, %v855
        %v1642 = vsel %vm1624, %v1609, %v857
        %v1643 = vsel %vm1624, %v1610, %v859
        %v1644 = vsel %vm1624, %v1611, %v861
        %v1645 = vsel %vm1624, %v1612, %v863
        %v1646 = vsel %vm1624, %v1613, %v865
        %v1647 = vsel %vm1624, %v1614, %v867
        %v1648 = vsel %vm1624, %v1615, %v869
        %v1649 = vsel %vm1624, %v1616, %v871
        %v1650 = vsel %vm1624, %v1617, %v873
        %v1651 = vsel %vm1624, %v1618, %v875
        %v1652 = vsel %vm1624, %v1619, %v877
        %v1653 = vsel %vm1624, %v1620, %v879
        %v1654 = vsel %vm1624, %v1621, %v881
        %v1655 = vsel %vm1624, %v1622, %v883
        %v1656 = vsel %vm1624, %v1623, %v885
        %vm1657 = vcmask 130048
        %v1658 = vsel %vm1657, %v1625, %v951
        %v1659 = vsel %vm1657, %v1626, %v953
        %v1660 = vsel %vm1657, %v1627, %v955
        %v1661 = vsel %vm1657, %v1628, %v957
        %v1662 = vsel %vm1657, %v1629, %v959
        %v1663 = vsel %vm1657, %v1630, %v961
        %v1664 = vsel %vm1657, %v1631, %v963
        %v1665 = vsel %vm1657, %v1632, %v965
        %v1666 = vsel %vm1657, %v1633, %v967
        %v1667 = vsel %vm1657, %v1634, %v969
        %v1668 = vsel %vm1657, %v1635, %v971
        %v1669 = vsel %vm1657, %v1636, %v973
        %v1670 = vsel %vm1657, %v1637, %v975
        %v1671 = vsel %vm1657, %v1638, %v977
        %v1672 = vsel %vm1657, %v1639, %v979
        %v1673 = vsel %vm1657, %v1640, %v981
        %v1674 = vsel %vm1657, %v1641, %v983
        %v1675 = vsel %vm1657, %v1642, %v985
        %v1676 = vsel %vm1657, %v1643, %v987
        %v1677 = vsel %vm1657, %v1644, %v989
        %v1678 = vsel %vm1657, %v1645, %v991
        %v1679 = vsel %vm1657, %v1646, %v993
        %v1680 = vsel %vm1657, %v1647, %v995
        %v1681 = vsel %vm1657, %v1648, %v997
        %v1682 = vsel %vm1657, %v1649, %v999
        %v1683 = vsel %vm1657, %v1650, %v1001
        %v1684 = vsel %vm1657, %v1651, %v1003
        %v1685 = vsel %vm1657, %v1652, %v1005
        %v1686 = vsel %vm1657, %v1653, %v1007
        %v1687 = vsel %vm1657, %v1654, %v1009
        %v1688 = vsel %vm1657, %v1655, %v1011
        %v1689 = vsel %vm1657, %v1656, %v1013
        %vm1690 = vcmask 162816
        %v1691 = vsel %vm1690, %v1658, %v1079
        %v1692 = vsel %vm1690, %v1659, %v1081
        %v1693 = vsel %vm1690, %v1660, %v1083
        %v1694 = vsel %vm1690, %v1661, %v1085
        %v1695 = vsel %vm1690, %v1662, %v1087
        %v1696 = vsel %vm1690, %v1663, %v1089
        %v1697 = vsel %vm1690, %v1664, %v1091
        %v1698 = vsel %vm1690, %v1665, %v1093
        %v1699 = vsel %vm1690, %v1666, %v1095
        %v1700 = vsel %vm1690, %v1667, %v1097
        %v1701 = vsel %vm1690, %v1668, %v1099
        %v1702 = vsel %vm1690, %v1669, %v1101
        %v1703 = vsel %vm1690, %v1670, %v1103
        %v1704 = vsel %vm1690, %v1671, %v1105
        %v1705 = vsel %vm1690, %v1672, %v1107
        %v1706 = vsel %vm1690, %v1673, %v1109
        %v1707 = vsel %vm1690, %v1674, %v1111
        %v1708 = vsel %vm1690, %v1675, %v1113
        %v1709 = vsel %vm1690, %v1676, %v1115
        %v1710 = vsel %vm1690, %v1677, %v1117
        %v1711 = vsel %vm1690, %v1678, %v1119
        %v1712 = vsel %vm1690, %v1679, %v1121
        %v1713 = vsel %vm1690, %v1680, %v1123
        %v1714 = vsel %vm1690, %v1681, %v1125
        %v1715 = vsel %vm1690, %v1682, %v1127
        %v1716 = vsel %vm1690, %v1683, %v1129
        %v1717 = vsel %vm1690, %v1684, %v1131
        %v1718 = vsel %vm1690, %v1685, %v1133
        %v1719 = vsel %vm1690, %v1686, %v1135
        %v1720 = vsel %vm1690, %v1687, %v1137
        %v1721 = vsel %vm1690, %v1688, %v1139
        %v1722 = vsel %vm1690, %v1689, %v1141
        %vm1723 = vcmask 195584
        %v1724 = vsel %vm1723, %v1691, %v1207
        %v1725 = vsel %vm1723, %v1692, %v1209
        %v1726 = vsel %vm1723, %v1693, %v1211
        %v1727 = vsel %vm1723, %v1694, %v1213
        %v1728 = vsel %vm1723, %v1695, %v1215
        %v1729 = vsel %vm1723, %v1696, %v1217
        %v1730 = vsel %vm1723, %v1697, %v1219
        %v1731 = vsel %vm1723, %v1698, %v1221
        %v1732 = vsel %vm1723, %v1699, %v1223
        %v1733 = vsel %vm1723, %v1700, %v1225
        %v1734 = vsel %vm1723, %v1701, %v1227
        %v1735 = vsel %vm1723, %v1702, %v1229
        %v1736 = vsel %vm1723, %v1703, %v1231
        %v1737 = vsel %vm1723, %v1704, %v1233
        %v1738 = vsel %vm1723, %v1705, %v1235
        %v1739 = vsel %vm1723, %v1706, %v1237
        %v1740 = vsel %vm1723, %v1707, %v1239
        %v1741 = vsel %vm1723, %v1708, %v1241
        %v1742 = vsel %vm1723, %v1709, %v1243
        %v1743 = vsel %vm1723, %v1710, %v1245
        %v1744 = vsel %vm1723, %v1711, %v1247
        %v1745 = vsel %vm1723, %v1712, %v1249
        %v1746 = vsel %vm1723, %v1713, %v1251
        %v1747 = vsel %vm1723, %v1714, %v1253
        %v1748 = vsel %vm1723, %v1715, %v1255
        %v1749 = vsel %vm1723, %v1716, %v1257
        %v1750 = vsel %vm1723, %v1717, %v1259
        %v1751 = vsel %vm1723, %v1718, %v1261
        %v1752 = vsel %vm1723, %v1719, %v1263
        %v1753 = vsel %vm1723, %v1720, %v1265
        %v1754 = vsel %vm1723, %v1721, %v1267
        %v1755 = vsel %vm1723, %v1722, %v1269
        %vm1756 = vcmask 228352
        %v1757 = vsel %vm1756, %v1724, %v1335
        %v1758 = vsel %vm1756, %v1725, %v1337
        %v1759 = vsel %vm1756, %v1726, %v1339
        %v1760 = vsel %vm1756, %v1727, %v1341
        %v1761 = vsel %vm1756, %v1728, %v1343
        %v1762 = vsel %vm1756, %v1729, %v1345
        %v1763 = vsel %vm1756, %v1730, %v1347
        %v1764 = vsel %vm1756, %v1731, %v1349
        %v1765 = vsel %vm1756, %v1732, %v1351
        %v1766 = vsel %vm1756, %v1733, %v1353
        %v1767 = vsel %vm1756, %v1734, %v1355
        %v1768 = vsel %vm1756, %v1735, %v1357
        %v1769 = vsel %vm1756, %v1736, %v1359
        %v1770 = vsel %vm1756, %v1737, %v1361
        %v1771 = vsel %vm1756, %v1738, %v1363
        %v1772 = vsel %vm1756, %v1739, %v1365
        %v1773 = vsel %vm1756, %v1740, %v1367
        %v1774 = vsel %vm1756, %v1741, %v1369
        %v1775 = vsel %vm1756, %v1742, %v1371
        %v1776 = vsel %vm1756, %v1743, %v1373
        %v1777 = vsel %vm1756, %v1744, %v1375
        %v1778 = vsel %vm1756, %v1745, %v1377
        %v1779 = vsel %vm1756, %v1746, %v1379
        %v1780 = vsel %vm1756, %v1747, %v1381
        %v1781 = vsel %vm1756, %v1748, %v1383
        %v1782 = vsel %vm1756, %v1749, %v1385
        %v1783 = vsel %vm1756, %v1750, %v1387
        %v1784 = vsel %vm1756, %v1751, %v1389
        %v1785 = vsel %vm1756, %v1752, %v1391
        %v1786 = vsel %vm1756, %v1753, %v1393
        %v1787 = vsel %vm1756, %v1754, %v1395
        %v1788 = vsel %vm1756, %v1755, %v1397
        %vm1789 = vcmask 261120
        %v1790 = vsel %vm1789, %v1757, %v1463
        %v1791 = vsel %vm1789, %v1758, %v1465
        %v1792 = vsel %vm1789, %v1759, %v1467
        %v1793 = vsel %vm1789, %v1760, %v1469
        %v1794 = vsel %vm1789, %v1761, %v1471
        %v1795 = vsel %vm1789, %v1762, %v1473
        %v1796 = vsel %vm1789, %v1763, %v1475
        %v1797 = vsel %vm1789, %v1764, %v1477
        %v1798 = vsel %vm1789, %v1765, %v1479
        %v1799 = vsel %vm1789, %v1766, %v1481
        %v1800 = vsel %vm1789, %v1767, %v1483
        %v1801 = vsel %vm1789, %v1768, %v1485
        %v1802 = vsel %vm1789, %v1769, %v1487
        %v1803 = vsel %vm1789, %v1770, %v1489
        %v1804 = vsel %vm1789, %v1771, %v1491
        %v1805 = vsel %vm1789, %v1772, %v1493
        %v1806 = vsel %vm1789, %v1773, %v1495
        %v1807 = vsel %vm1789, %v1774, %v1497
        %v1808 = vsel %vm1789, %v1775, %v1499
        %v1809 = vsel %vm1789, %v1776, %v1501
        %v1810 = vsel %vm1789, %v1777, %v1503
        %v1811 = vsel %vm1789, %v1778, %v1505
        %v1812 = vsel %vm1789, %v1779, %v1507
        %v1813 = vsel %vm1789, %v1780, %v1509
        %v1814 = vsel %vm1789, %v1781, %v1511
        %v1815 = vsel %vm1789, %v1782, %v1513
        %v1816 = vsel %vm1789, %v1783, %v1515
        %v1817 = vsel %vm1789, %v1784, %v1517
        %v1818 = vsel %vm1789, %v1785, %v1519
        %v1819 = vsel %vm1789, %v1786, %v1521
        %v1820 = vsel %vm1789, %v1787, %v1523
        %v1821 = vsel %vm1789, %v1788, %v1525
        %v1822 = vld [vmem:[%s1] sm:$0xff]
        %v1823 = vld [vmem:[%s1 + $0x8] sm:$0xff]
        %v1824 = vld [vmem:[%s1 + $0x10] sm:$0xff]
        %v1825 = vld [vmem:[%s1 + $0x18] sm:$0xff]
        %v1826 = vld [vmem:[%s1 + $0x20] sm:$0xf]
        %v1827 = vld [vmem:[%s2] sm:$0x1]
        %v1829 = vperm.slane %v1827, 0
        %vm1831 = vcmask 293888
        %v1833 = vsel %vm1831, %v1790, 0
        %v1836 = vsel %vm1831, %v1791, 0
        %v1839 = vsel %vm1831, %v1792, 0
        %v1842 = vsel %vm1831, %v1793, 0
        %v1845 = vsel %vm1831, %v1794, 0
        %v1848 = vsel %vm1831, %v1795, 0
        %v1851 = vsel %vm1831, %v1796, 0
        %v1854 = vsel %vm1831, %v1797, 0
        %v1857 = vsel %vm1831, %v1798, 0
        %v1860 = vsel %vm1831, %v1799, 0
        %v1863 = vsel %vm1831, %v1800, 0
        %v1866 = vsel %vm1831, %v1801, 0
        %v1869 = vsel %vm1831, %v1802, 0
        %v1872 = vsel %vm1831, %v1803, 0
        %v1875 = vsel %vm1831, %v1804, 0
        %v1878 = vsel %vm1831, %v1805, 0
        %v1881 = vsel %vm1831, %v1806, 0
        %v1884 = vsel %vm1831, %v1807, 0
        %v1887 = vsel %vm1831, %v1808, 0
        %v1890 = vsel %vm1831, %v1809, 0
        %v1893 = vsel %vm1831, %v1810, 0
        %v1896 = vsel %vm1831, %v1811, 0
        %v1899 = vsel %vm1831, %v1812, 0
        %v1902 = vsel %vm1831, %v1813, 0
        %v1905 = vsel %vm1831, %v1814, 0
        %v1908 = vsel %vm1831, %v1815, 0
        %v1911 = vsel %vm1831, %v1816, 0
        %v1914 = vsel %vm1831, %v1817, 0
        %v1917 = vsel %vm1831, %v1818, 0
        %v1920 = vsel %vm1831, %v1819, 0
        %v1923 = vsel %vm1831, %v1820, 0
        %v1926 = vsel %vm1831, %v1821, 0
        %vm1928 = vcmask 1043456
        %v1930 = vsel %vm1928, %v1826, 0
        %1932 = vmatpush.msra.mxu0 0.0
        %1933 = vmatpush.msra.mxu0 0.0
        %1934 = vmatpush.msra.mxu0 0.0
        %1935 = vmatpush.msra.mxu0 0.0
        %1936 = vmatpush.msra.mxu0 0.0
        %1937 = vmatpush.msra.mxu0 0.0
        %1938 = vmatpush.msra.mxu0 0.0
        %1939 = vmatpush.msra.mxu0 0.0
        %1940 = vmatpush.msra.mxu0 0.0
        %1941 = vmatpush.msra.mxu0 0.0
        %1942 = vmatpush.msra.mxu0 0.0
        %1943 = vmatpush.msra.mxu0 %v1930
        %1944 = vmatpush.msra.mxu0 %v1825
        %1945 = vmatpush.msra.mxu0 %v1824
        %1946 = vmatpush.msra.mxu0 %v1823
        %1947 = vmatpush.msra.mxu0 %v1822
        %1948 = vmatmul.f32.gmra.mxu0 %v1833
        %v1949 = vpop.f32.mrf.mxu0
        %v1950 = vadd.f32 %v1829, %v1949
        %1951 = vmatmul.f32.gmra.mxu0 %v1836
        %v1952 = vpop.f32.mrf.mxu0
        %v1953 = vadd.f32 %v1829, %v1952
        %1954 = vmatmul.f32.gmra.mxu0 %v1839
        %v1955 = vpop.f32.mrf.mxu0
        %v1956 = vadd.f32 %v1829, %v1955
        %1957 = vmatmul.f32.gmra.mxu0 %v1842
        %v1958 = vpop.f32.mrf.mxu0
        %v1959 = vadd.f32 %v1829, %v1958
        %1960 = vmatmul.f32.gmra.mxu0 %v1845
        %v1961 = vpop.f32.mrf.mxu0
        %v1962 = vadd.f32 %v1829, %v1961
        %1963 = vmatmul.f32.gmra.mxu0 %v1848
        %v1964 = vpop.f32.mrf.mxu0
        %v1965 = vadd.f32 %v1829, %v1964
        %1966 = vmatmul.f32.gmra.mxu0 %v1851
        %v1967 = vpop.f32.mrf.mxu0
        %v1968 = vadd.f32 %v1829, %v1967
        %1969 = vmatmul.f32.gmra.mxu0 %v1854
        %v1970 = vpop.f32.mrf.mxu0
        %v1971 = vadd.f32 %v1829, %v1970
        %1972 = vmatmul.f32.gmra.mxu0 %v1857
        %v1973 = vpop.f32.mrf.mxu0
        %v1974 = vadd.f32 %v1829, %v1973
        %1975 = vmatmul.f32.gmra.mxu0 %v1860
        %v1976 = vpop.f32.mrf.mxu0
        %v1977 = vadd.f32 %v1829, %v1976
        %1978 = vmatmul.f32.gmra.mxu0 %v1863
        %v1979 = vpop.f32.mrf.mxu0
        %v1980 = vadd.f32 %v1829, %v1979
        %1981 = vmatmul.f32.gmra.mxu0 %v1866
        %v1982 = vpop.f32.mrf.mxu0
        %v1983 = vadd.f32 %v1829, %v1982
        %1984 = vmatmul.f32.gmra.mxu0 %v1869
        %v1985 = vpop.f32.mrf.mxu0
        %v1986 = vadd.f32 %v1829, %v1985
        %1987 = vmatmul.f32.gmra.mxu0 %v1872
        %v1988 = vpop.f32.mrf.mxu0
        %v1989 = vadd.f32 %v1829, %v1988
        %1990 = vmatmul.f32.gmra.mxu0 %v1875
        %v1991 = vpop.f32.mrf.mxu0
        %v1992 = vadd.f32 %v1829, %v1991
        %1993 = vmatmul.f32.gmra.mxu0 %v1878
        %v1994 = vpop.f32.mrf.mxu0
        %v1995 = vadd.f32 %v1829, %v1994
        %1996 = vmatmul.f32.gmra.mxu0 %v1881
        %v1997 = vpop.f32.mrf.mxu0
        %v1998 = vadd.f32 %v1829, %v1997
        %1999 = vmatmul.f32.gmra.mxu0 %v1884
        %v2000 = vpop.f32.mrf.mxu0
        %v2001 = vadd.f32 %v1829, %v2000
        %2002 = vmatmul.f32.gmra.mxu0 %v1887
        %v2003 = vpop.f32.mrf.mxu0
        %v2004 = vadd.f32 %v1829, %v2003
        %2005 = vmatmul.f32.gmra.mxu0 %v1890
        %v2006 = vpop.f32.mrf.mxu0
        %v2007 = vadd.f32 %v1829, %v2006
        %2008 = vmatmul.f32.gmra.mxu0 %v1893
        %v2009 = vpop.f32.mrf.mxu0
        %v2010 = vadd.f32 %v1829, %v2009
        %2011 = vmatmul.f32.gmra.mxu0 %v1896
        %v2012 = vpop.f32.mrf.mxu0
        %v2013 = vadd.f32 %v1829, %v2012
        %2014 = vmatmul.f32.gmra.mxu0 %v1899
        %v2015 = vpop.f32.mrf.mxu0
        %v2016 = vadd.f32 %v1829, %v2015
        %2017 = vmatmul.f32.gmra.mxu0 %v1902
        %v2018 = vpop.f32.mrf.mxu0
        %v2019 = vadd.f32 %v1829, %v2018
        %2020 = vmatmul.f32.gmra.mxu0 %v1905
        %v2021 = vpop.f32.mrf.mxu0
        %v2022 = vadd.f32 %v1829, %v2021
        %2023 = vmatmul.f32.gmra.mxu0 %v1908
        %v2024 = vpop.f32.mrf.mxu0
        %v2025 = vadd.f32 %v1829, %v2024
        %2026 = vmatmul.f32.gmra.mxu0 %v1911
        %v2027 = vpop.f32.mrf.mxu0
        %v2028 = vadd.f32 %v1829, %v2027
        %2029 = vmatmul.f32.gmra.mxu0 %v1914
        %v2030 = vpop.f32.mrf.mxu0
        %v2031 = vadd.f32 %v1829, %v2030
        %2032 = vmatmul.f32.gmra.mxu0 %v1917
        %v2033 = vpop.f32.mrf.mxu0
        %v2034 = vadd.f32 %v1829, %v2033
        %2035 = vmatmul.f32.gmra.mxu0 %v1920
        %v2036 = vpop.f32.mrf.mxu0
        %v2037 = vadd.f32 %v1829, %v2036
        %2038 = vmatmul.f32.gmra.mxu0 %v1923
        %v2039 = vpop.f32.mrf.mxu0
        %v2040 = vadd.f32 %v1829, %v2039
        %2041 = vmatmul.f32.gmra.mxu0 %v1926
        %v2042 = vpop.f32.mrf.mxu0
        %v2043 = vadd.f32 %v1829, %v2042
        %2044 = vdwg.mxu0
        %2045 = vst.msk [vmem:[%s243] sm:$0xff] %vm1657, %v1950
        %2046 = vst.msk [vmem:[%s243 + $0x8] sm:$0xff] %vm1657, %v1953
        %2047 = vst.msk [vmem:[%s243 + $0x10] sm:$0xff] %vm1657, %v1956
        %2048 = vst.msk [vmem:[%s243 + $0x18] sm:$0xff] %vm1657, %v1959
        %2049 = vst.msk [vmem:[%s243 + $0x20] sm:$0xff] %vm1657, %v1962
        %2050 = vst.msk [vmem:[%s243 + $0x28] sm:$0xff] %vm1657, %v1965
        %2051 = vst.msk [vmem:[%s243 + $0x30] sm:$0xff] %vm1657, %v1968
        %2052 = vst.msk [vmem:[%s243 + $0x38] sm:$0xff] %vm1657, %v1971
        %2053 = vst.msk [vmem:[%s243 + $0x40] sm:$0xff] %vm1657, %v1974
        %2054 = vst.msk [vmem:[%s243 + $0x48] sm:$0xff] %vm1657, %v1977
        %2055 = vst.msk [vmem:[%s243 + $0x50] sm:$0xff] %vm1657, %v1980
        %2056 = vst.msk [vmem:[%s243 + $0x58] sm:$0xff] %vm1657, %v1983
        %2057 = vst.msk [vmem:[%s243 + $0x60] sm:$0xff] %vm1657, %v1986
        %2058 = vst.msk [vmem:[%s243 + $0x68] sm:$0xff] %vm1657, %v1989
        %2059 = vst.msk [vmem:[%s243 + $0x70] sm:$0xff] %vm1657, %v1992
        %2060 = vst.msk [vmem:[%s243 + $0x78] sm:$0xff] %vm1657, %v1995
        %2061 = vst.msk [vmem:[%s243 + $0x80] sm:$0xff] %vm1657, %v1998
        %2062 = vst.msk [vmem:[%s243 + $0x88] sm:$0xff] %vm1657, %v2001
        %2063 = vst.msk [vmem:[%s243 + $0x90] sm:$0xff] %vm1657, %v2004
        %2064 = vst.msk [vmem:[%s243 + $0x98] sm:$0xff] %vm1657, %v2007
        %2065 = vst.msk [vmem:[%s243 + $0xa0] sm:$0xff] %vm1657, %v2010
        %2066 = vst.msk [vmem:[%s243 + $0xa8] sm:$0xff] %vm1657, %v2013
        %2067 = vst.msk [vmem:[%s243 + $0xb0] sm:$0xff] %vm1657, %v2016
        %2068 = vst.msk [vmem:[%s243 + $0xb8] sm:$0xff] %vm1657, %v2019
        %2069 = vst.msk [vmem:[%s243 + $0xc0] sm:$0xff] %vm1657, %v2022
        %2070 = vst.msk [vmem:[%s243 + $0xc8] sm:$0xff] %vm1657, %v2025
        %2071 = vst.msk [vmem:[%s243 + $0xd0] sm:$0xff] %vm1657, %v2028
        %2072 = vst.msk [vmem:[%s243 + $0xd8] sm:$0xff] %vm1657, %v2031
        %2073 = vst.msk [vmem:[%s243 + $0xe0] sm:$0xff] %vm1657, %v2034
        %2074 = vst.msk [vmem:[%s243 + $0xe8] sm:$0xff] %vm1657, %v2037
        %2075 = vst.msk [vmem:[%s243 + $0xf0] sm:$0xff] %vm1657, %v2040
        %2076 = vst.msk [vmem:[%s243 + $0xf8] sm:$0xff] %vm1657, %v2043
        %v2077 = vsel %vm1657, %v1950, 0.0
        %v2078 = vsel %vm1657, %v1953, 0.0
        %v2079 = vadd.f32 %v2077, %v2078
        %v2080 = vsel %vm1657, %v1956, 0.0
        %v2081 = vadd.f32 %v2079, %v2080
        %v2082 = vsel %vm1657, %v1959, 0.0
        %v2083 = vadd.f32 %v2081, %v2082
        %v2084 = vsel %vm1657, %v1962, 0.0
        %v2085 = vadd.f32 %v2083, %v2084
        %v2086 = vsel %vm1657, %v1965, 0.0
        %v2087 = vadd.f32 %v2085, %v2086
        %v2088 = vsel %vm1657, %v1968, 0.0
        %v2089 = vadd.f32 %v2087, %v2088
        %v2090 = vsel %vm1657, %v1971, 0.0
        %v2091 = vadd.f32 %v2089, %v2090
        %v2092 = vsel %vm1657, %v1974, 0.0
        %v2093 = vadd.f32 %v2091, %v2092
        %v2094 = vsel %vm1657, %v1977, 0.0
        %v2095 = vadd.f32 %v2093, %v2094
        %v2096 = vsel %vm1657, %v1980, 0.0
        %v2097 = vadd.f32 %v2095, %v2096
        %v2098 = vsel %vm1657, %v1983, 0.0
        %v2099 = vadd.f32 %v2097, %v2098
        %v2100 = vsel %vm1657, %v1986, 0.0
        %v2101 = vadd.f32 %v2099, %v2100
        %v2102 = vsel %vm1657, %v1989, 0.0
        %v2103 = vadd.f32 %v2101, %v2102
        %v2104 = vsel %vm1657, %v1992, 0.0
        %v2105 = vadd.f32 %v2103, %v2104
        %v2106 = vsel %vm1657, %v1995, 0.0
        %v2107 = vadd.f32 %v2105, %v2106
        %v2108 = vsel %vm1657, %v1998, 0.0
        %v2109 = vadd.f32 %v2107, %v2108
        %v2110 = vsel %vm1657, %v2001, 0.0
        %v2111 = vadd.f32 %v2109, %v2110
        %v2112 = vsel %vm1657, %v2004, 0.0
        %v2113 = vadd.f32 %v2111, %v2112
        %v2114 = vsel %vm1657, %v2007, 0.0
        %v2115 = vadd.f32 %v2113, %v2114
        %v2116 = vsel %vm1657, %v2010, 0.0
        %v2117 = vadd.f32 %v2115, %v2116
        %v2118 = vsel %vm1657, %v2013, 0.0
        %v2119 = vadd.f32 %v2117, %v2118
        %v2120 = vsel %vm1657, %v2016, 0.0
        %v2121 = vadd.f32 %v2119, %v2120
        %v2122 = vsel %vm1657, %v2019, 0.0
        %v2123 = vadd.f32 %v2121, %v2122
        %v2124 = vsel %vm1657, %v2022, 0.0
        %v2125 = vadd.f32 %v2123, %v2124
        %v2126 = vsel %vm1657, %v2025, 0.0
        %v2127 = vadd.f32 %v2125, %v2126
        %v2128 = vsel %vm1657, %v2028, 0.0
        %v2129 = vadd.f32 %v2127, %v2128
        %v2130 = vsel %vm1657, %v2031, 0.0
        %v2131 = vadd.f32 %v2129, %v2130
        %v2132 = vsel %vm1657, %v2034, 0.0
        %v2133 = vadd.f32 %v2131, %v2132
        %v2134 = vsel %vm1657, %v2037, 0.0
        %v2135 = vadd.f32 %v2133, %v2134
        %v2136 = vsel %vm1657, %v2040, 0.0
        %v2137 = vadd.f32 %v2135, %v2136
        %v2138 = vsel %vm1657, %v2043, 0.0
        %v2139 = vadd.f32 %v2137, %v2138
        %v2140 = vrot.slane %v2139, 4
        %v2141 = vadd.f32 %v2139, %v2140
        %v2142 = vrot.slane %v2141, 2
        %v2143 = vadd.f32 %v2141, %v2142
        %v2144 = vrot.slane %v2143, 1
        %v2145 = vadd.f32 %v2143, %v2144
        %vm2146 = vcmask 122880
        %2147 = vst.msk [vmem:[%s227] sm:$0x1] %vm2146, %v2145
        %v2148 = vmul.f32 %v1950, %v1950
        %v2149 = vmul.f32 %v1953, %v1953
        %v2150 = vmul.f32 %v1956, %v1956
        %v2151 = vmul.f32 %v1959, %v1959
        %v2152 = vmul.f32 %v1962, %v1962
        %v2153 = vmul.f32 %v1965, %v1965
        %v2154 = vmul.f32 %v1968, %v1968
        %v2155 = vmul.f32 %v1971, %v1971
        %v2156 = vmul.f32 %v1974, %v1974
        %v2157 = vmul.f32 %v1977, %v1977
        %v2158 = vmul.f32 %v1980, %v1980
        %v2159 = vmul.f32 %v1983, %v1983
        %v2160 = vmul.f32 %v1986, %v1986
        %v2161 = vmul.f32 %v1989, %v1989
        %v2162 = vmul.f32 %v1992, %v1992
        %v2163 = vmul.f32 %v1995, %v1995
        %v2164 = vmul.f32 %v1998, %v1998
        %v2165 = vmul.f32 %v2001, %v2001
        %v2166 = vmul.f32 %v2004, %v2004
        %v2167 = vmul.f32 %v2007, %v2007
        %v2168 = vmul.f32 %v2010, %v2010
        %v2169 = vmul.f32 %v2013, %v2013
        %v2170 = vmul.f32 %v2016, %v2016
        %v2171 = vmul.f32 %v2019, %v2019
        %v2172 = vmul.f32 %v2022, %v2022
        %v2173 = vmul.f32 %v2025, %v2025
        %v2174 = vmul.f32 %v2028, %v2028
        %v2175 = vmul.f32 %v2031, %v2031
        %v2176 = vmul.f32 %v2034, %v2034
        %v2177 = vmul.f32 %v2037, %v2037
        %v2178 = vmul.f32 %v2040, %v2040
        %v2179 = vmul.f32 %v2043, %v2043
        %v2180 = vsel %vm1657, %v2148, 0.0
        %v2181 = vsel %vm1657, %v2149, 0.0
        %v2182 = vadd.f32 %v2180, %v2181
        %v2183 = vsel %vm1657, %v2150, 0.0
        %v2184 = vadd.f32 %v2182, %v2183
        %v2185 = vsel %vm1657, %v2151, 0.0
        %v2186 = vadd.f32 %v2184, %v2185
        %v2187 = vsel %vm1657, %v2152, 0.0
        %v2188 = vadd.f32 %v2186, %v2187
        %v2189 = vsel %vm1657, %v2153, 0.0
        %v2190 = vadd.f32 %v2188, %v2189
        %v2191 = vsel %vm1657, %v2154, 0.0
        %v2192 = vadd.f32 %v2190, %v2191
        %v2193 = vsel %vm1657, %v2155, 0.0
        %v2194 = vadd.f32 %v2192, %v2193
        %v2195 = vsel %vm1657, %v2156, 0.0
        %v2196 = vadd.f32 %v2194, %v2195
        %v2197 = vsel %vm1657, %v2157, 0.0
        %v2198 = vadd.f32 %v2196, %v2197
        %v2199 = vsel %vm1657, %v2158, 0.0
        %v2200 = vadd.f32 %v2198, %v2199
        %v2201 = vsel %vm1657, %v2159, 0.0
        %v2202 = vadd.f32 %v2200, %v2201
        %v2203 = vsel %vm1657, %v2160, 0.0
        %v2204 = vadd.f32 %v2202, %v2203
        %v2205 = vsel %vm1657, %v2161, 0.0
        %v2206 = vadd.f32 %v2204, %v2205
        %v2207 = vsel %vm1657, %v2162, 0.0
        %v2208 = vadd.f32 %v2206, %v2207
        %v2209 = vsel %vm1657, %v2163, 0.0
        %v2210 = vadd.f32 %v2208, %v2209
        %v2211 = vsel %vm1657, %v2164, 0.0
        %v2212 = vadd.f32 %v2210, %v2211
        %v2213 = vsel %vm1657, %v2165, 0.0
        %v2214 = vadd.f32 %v2212, %v2213
        %v2215 = vsel %vm1657, %v2166, 0.0
        %v2216 = vadd.f32 %v2214, %v2215
        %v2217 = vsel %vm1657, %v2167, 0.0
        %v2218 = vadd.f32 %v2216, %v2217
        %v2219 = vsel %vm1657, %v2168, 0.0
        %v2220 = vadd.f32 %v2218, %v2219
        %v2221 = vsel %vm1657, %v2169, 0.0
        %v2222 = vadd.f32 %v2220, %v2221
        %v2223 = vsel %vm1657, %v2170, 0.0
        %v2224 = vadd.f32 %v2222, %v2223
        %v2225 = vsel %vm1657, %v2171, 0.0
        %v2226 = vadd.f32 %v2224, %v2225
        %v2227 = vsel %vm1657, %v2172, 0.0
        %v2228 = vadd.f32 %v2226, %v2227
        %v2229 = vsel %vm1657, %v2173, 0.0
        %v2230 = vadd.f32 %v2228, %v2229
        %v2231 = vsel %vm1657, %v2174, 0.0
        %v2232 = vadd.f32 %v2230, %v2231
        %v2233 = vsel %vm1657, %v2175, 0.0
        %v2234 = vadd.f32 %v2232, %v2233
        %v2235 = vsel %vm1657, %v2176, 0.0
        %v2236 = vadd.f32 %v2234, %v2235
        %v2237 = vsel %vm1657, %v2177, 0.0
        %v2238 = vadd.f32 %v2236, %v2237
        %v2239 = vsel %vm1657, %v2178, 0.0
        %v2240 = vadd.f32 %v2238, %v2239
        %v2241 = vsel %vm1657, %v2179, 0.0
        %v2242 = vadd.f32 %v2240, %v2241
        %v2243 = vrot.slane %v2242, 4
        %v2244 = vadd.f32 %v2242, %v2243
        %v2245 = vrot.slane %v2244, 2
        %v2246 = vadd.f32 %v2244, %v2245
        %v2247 = vrot.slane %v2246, 1
        %v2248 = vadd.f32 %v2246, %v2247
        %2249 = vst.msk [vmem:[%s233] sm:$0x1] %vm2146, %v2248
        %p2250 = scmp.lt.s32.totalorder %s23, 1
        %s2251 = scalar_select %p2250, %s23, 1
        %s2252 = smul.addr %s2251, 32
        %s2253 = smul.addr %s2252, 8
        %s2254 = scalar_lea.vmem %s3, %s2253
        %s2255 = sand.u32 %s125, 1
        %s2256 = scalar_lea.sflag [#allocation3], %s2255
        %s2257 = sand.u32 %s125, 1
        %s2258 = scalar_lea.vmem [#allocation2], %s2257
        %s2259 = sand.u32 %s151, 1
        %s2260 = scalar_lea.sflag [#allocation5], %s2259
        %s2261 = sand.u32 %s151, 1
        %s2262 = scalar_lea.vmem [#allocation4], %s2261
        // Predicated region
        $region33: #{tpu_custom_call.1} parent=31 // pred_check
          %p2263 = pneg %p109
        $region34: #{tpu_custom_call.1} parent=31 // pred_check_branch
          %2265 = sbr.rel (%p2263) target = $region36
        $region35: #{tpu_custom_call.1} parent=31 // pred_region
          _
        $region36: #{tpu_custom_call.1} parent=31 // pred_fallthru
          _
        // Predicated region
        $region37: #{tpu_custom_call.1} parent=31 // pred_check
          %p2266 = pneg %p135
        $region38: #{tpu_custom_call.1} parent=31 // pred_check_branch
          %2268 = sbr.rel (%p2266) target = $region40
        $region39: #{tpu_custom_call.1} parent=31 // pred_region
          %2270 = vsyncadd %s2256, 0
          %s2271 = scalar_lea.hbm %s4, %s23
          %s2273 = sshll.u32 %s2258, 4
          %s2274 = int_to_ptr.vmem [resolvable:$true] %s2273
          %s2275 = sshll.u32 %s2271, 4
          %s2276 = int_to_ptr.hbm [resolvable:$true] %s2275
          %2278 = dma.vmem_to_hbm [thread:$0]  %s2274, 16, %s2276, %s2256
        $region40: #{tpu_custom_call.1} parent=31 // pred_fallthru
          _
        // Predicated region
        $region41: #{tpu_custom_call.1} parent=31 // pred_check
          %p2279 = pneg %p161
        $region42: #{tpu_custom_call.1} parent=31 // pred_check_branch
          %2281 = sbr.rel (%p2279) target = $region44
        $region43: #{tpu_custom_call.1} parent=31 // pred_region
          %2283 = vsyncadd %s2260, 0
          %s2284 = scalar_lea.hbm %s5, %s23
          %s2286 = sshll.u32 %s2262, 4
          %s2287 = int_to_ptr.vmem [resolvable:$true] %s2286
          %s2288 = sshll.u32 %s2284, 4
          %s2289 = int_to_ptr.hbm [resolvable:$true] %s2288
          %2291 = dma.vmem_to_hbm [thread:$0]  %s2287, 16, %s2289, %s2260
        $region44: #{tpu_custom_call.1} parent=31 // pred_fallthru
          _
      $region32: #{tpu_custom_call.1} parent=5 // pred_fallthru
        _
      %p2292 = scmp.le.s32.totalorder 2, %s18
      // Predicated region
      $region45: #{tpu_custom_call.1} parent=5 // pred_check
        %p2293 = pneg %p2292
      $region46: #{tpu_custom_call.1} parent=5 // pred_check_branch
        %2295 = sbr.rel (%p2293) target = $region48
      $region47: #{tpu_custom_call.1} parent=5 // pred_region
        %s2296 = ssub.s32 %s18, 2
        // Predicated region
        $region49: #{tpu_custom_call.1} parent=47 // pred_check
          %p2297 = pneg %p115
        $region50: #{tpu_custom_call.1} parent=47 // pred_check_branch
          %2299 = sbr.rel (%p2297) target = $region52
        $region51: #{tpu_custom_call.1} parent=47 // pred_region
          %p2300 = scmp.lt.s32.totalorder %s24, 1
          %s2301 = scalar_select %p2300, %s24, 1
          %s2302 = smul.addr %s2301, 32
          %s2303 = smul.addr %s2302, 8
          %s2304 = scalar_lea.vmem %s3, %s2303
        $region52: #{tpu_custom_call.1} parent=47 // pred_fallthru
          _
        // Predicated region
        $region53: #{tpu_custom_call.1} parent=47 // pred_check
          %p2305 = pneg %p141
        $region54: #{tpu_custom_call.1} parent=47 // pred_check_branch
          %2307 = sbr.rel (%p2305) target = $region56
        $region55: #{tpu_custom_call.1} parent=47 // pred_region
          %s2308 = sand.u32 %s126, 1
          %s2309 = scalar_lea.sflag [#allocation3], %s2308
          %s2310 = sand.u32 %s126, 1
          %s2311 = scalar_lea.vmem [#allocation2], %s2310
          %2313 = dma.done %s2309, 16
        $region56: #{tpu_custom_call.1} parent=47 // pred_fallthru
          _
        // Predicated region
        $region57: #{tpu_custom_call.1} parent=47 // pred_check
          %p2314 = pneg %p167
        $region58: #{tpu_custom_call.1} parent=47 // pred_check_branch
          %2316 = sbr.rel (%p2314) target = $region60
        $region59: #{tpu_custom_call.1} parent=47 // pred_region
          %s2317 = sand.u32 %s152, 1
          %s2318 = scalar_lea.sflag [#allocation5], %s2317
          %s2319 = sand.u32 %s152, 1
          %s2320 = scalar_lea.vmem [#allocation4], %s2319
          %2322 = dma.done %s2318, 16
        $region60: #{tpu_custom_call.1} parent=47 // pred_fallthru
          _
      $region48: #{tpu_custom_call.1} parent=5 // pred_fallthru
        _
    $region6: #{tpu_custom_call.1} parent=1 // loop_footer
      %s22 = sadd.s32 1, %s18
    $region7: #{tpu_custom_call.1} parent=1 // loop_footer_branch
      %17 = sbr.rel target = $region3
    $region8: #{tpu_custom_call.1} parent=1 // loop_exit
      _
    %2323 = vsyncpa [#allocation3], 1
    %s2324 = scalar_lea.sflag [#allocation3], 1
    %2325 = vsyncpa %s2324, 1
    %2326 = vsyncpa [#allocation5], 1
    %s2327 = scalar_lea.sflag [#allocation5], 1
    %2328 = vsyncpa %s2327, 1

</llo_original>
